<compile_context>
chip_gen: v6e
topology: v6e:2x2x1
jax: 0.10.0
libtpu: 0.0.40
codegen_flags: <defaults>
</compile_context>

<pallas_src>
import functools

import numpy as np
import jax
import jax.numpy as jnp
from jax.experimental import pallas as pl
from jax.experimental.pallas import tpu as pltpu


# ----------------------------------------------------------------------------
# Host-side operator construction (deterministic, exact).
# ----------------------------------------------------------------------------
def _build_resample_matrix(n_in, scale=7, pool=8):
    """R such that (R @ x @ R^T) == AvgPool2d(pool)(Upsample(scale, nearest)(x))."""
    n_up = scale * n_in
    n_out = (n_up - pool) // pool + 1
    r = np.zeros((n_out, n_in), np.float32)
    for o in range(n_out):
        for j in range(pool):
            r[o, (pool * o + j) // scale] += 1.0 / pool
    return r


def _build_patch_mean_matrix(n_out, patch):
    """A such that (A @ p @ A^T)[i, j] == mean over patches of p[pr*ps+i, pc*ps+j]."""
    n = n_out // patch
    a = np.zeros((patch, n_out), np.float32)
    for i in range(patch):
        for p in range(n):
            a[i, p * patch + i] = 1.0 / n
    return a


def _round_up(x, m):
    return (x + m - 1) // m * m


def _choose_tile_b(batch):
    """Batch tile: multiple of 16 (bf16 packing), <=256 rows, and >=2 grid
    tiles whenever the batch allows it (v7x has 2 TensorCores)."""
    b16 = _round_up(batch, 16)
    if b16 <= 16:
        return 16
    half = _round_up((b16 + 1) // 2, 16)
    return min(256, half)


# ----------------------------------------------------------------------------
# Fused kernel: one bf16 MXU matmul (folded resample+patch-mean+embed+proj),
# bias, L2-normalise, cosine similarity, per-sample loss.  One grid step
# handles TILE_B samples; grid is parallel over batch tiles.
# ----------------------------------------------------------------------------
def _clip_loss_kernel(x_ref, w_ref, b_ref, orig_ref, out_ref, *, batch, tile_b):
    t = pl.program_id(0)

    # Whole synthetic encoder as a single matmul: bf16 operands, f32 accum.
    # TODO(synk): real CLIP ViT transformer stack would act on patch tokens
    #             here; replaced by the mean-pooled synthetic linear encoder.
    feat = jnp.dot(x_ref[...], w_ref[...],
                   preferred_element_type=jnp.float32)            # (TB, Ep)
    feat = feat + b_ref[...]

    # L2-normalisation in f32; the divide goes to the EUP slot (approx recip).
    feat_n = jnp.sqrt(jnp.sum(feat * feat, axis=-1, keepdims=True))
    feat = feat * pl.reciprocal(feat_n + 1e-8, approx=True)

    orig = orig_ref[...]                                          # (TB, Ep) f32
    orig_n = jnp.sqrt(jnp.sum(orig * orig, axis=-1, keepdims=True))
    orig = orig * pl.reciprocal(orig_n + 1e-8, approx=True)

    sim = jnp.sum(feat * orig, axis=-1, keepdims=True)            # (TB, 1)

    rows = jax.lax.broadcasted_iota(jnp.int32, (tile_b, 1), 0) + t * tile_b
    per_sample = jnp.where(rows < batch, 1.0 - sim, 0.0)          # mask padding
    # Lane-dense (TB, 128) store: per-sample loss broadcast across lanes.
    out_ref[...] = jnp.broadcast_to(per_sample, (tile_b, out_ref.shape[1]))


def clip_loss(recon, orig_features, params, patch_size, tile_b=None):
    """recon: (B, C, H, W); orig_features: (B, E) -> scalar loss."""
    w_embed, b_embed, w_proj = params
    B, C, H, W = recon.shape
    assert H == W, "square inputs assumed (module implies 256x256 -> 224 -> 28)"

    r = _build_resample_matrix(H)                     # (Ho, H) upsample+avgpool
    n_out = r.shape[0]
    assert n_out % patch_size == 0
    a = _build_patch_mean_matrix(n_out, patch_size)   # (ps, Ho) mean over patches
    q = (a @ r).astype(np.float32)                    # (ps, H) composed operator

    hw = H * W
    pp = patch_size * patch_size
    chw = C * hw
    width = w_embed.shape[1]
    e = w_proj.shape[1]

    e_p = _round_up(e, 128)
    chw_p = _round_up(chw, 128)

    if tile_b is None:
        tile_b = _choose_tile_b(B)
    assert tile_b % 16 == 0
    num_tiles = pl.cdiv(B, tile_b)
    bp = num_tiles * tile_b        # last tile is partial at worst, never empty

    # GT[(h,w),(i,j)] = Q[i,h]*Q[j,w]  (resample + patch-mean, per channel).
    gt = jnp.asarray(np.einsum('ih,jw->hwij', q, q).reshape(hw, pp))

    # Fold the entire linear encoder chain into ONE (C*H*W, E) operator:
    #   feat[b] = recon[b].reshape(C*H*W) @ W_full + b_e @ W_p
    we = w_embed.astype(jnp.float32).reshape(C, pp, width)
    wp = w_proj.astype(jnp.float32)
    w_full = jnp.einsum('kp,cpe->cke', gt,
                        jnp.einsum('cpw,we->cpe', we, wp)).reshape(chw, e)
    b_full = b_embed.astype(jnp.float32) @ wp                     # (1, E)

    # Zero-pad to lane-dense multiples of 128 (exact: padded rows/cols are 0),
    # cast the heavy streams to bf16 (f32 accumulation inside the kernel).
    w_full = jnp.pad(w_full, ((0, chw_p - chw), (0, e_p - e))).astype(jnp.bfloat16)
    b_full = jnp.pad(b_full, ((0, 0), (0, e_p - e)))
    orig = jnp.pad(orig_features.astype(jnp.float32),
                   ((0, bp - B), (0, e_p - e)))

    # Free reshape (contiguous) + batch/lane zero-pad of the input stream.
    xr = jnp.pad(recon.reshape(B, chw).astype(jnp.bfloat16),
                 ((0, bp - B), (0, chw_p - chw)))

    kern = functools.partial(_clip_loss_kernel, batch=B, tile_b=tile_b)
    out = pl.pallas_call(
        kern,
        out_shape=jax.ShapeDtypeStruct((bp, 128), jnp.float32),
        grid_spec=pltpu.PrefetchScalarGridSpec(
            num_scalar_prefetch=0,
            grid=(num_tiles,),
            in_specs=[
                pl.BlockSpec((tile_b, chw_p), lambda t: (t, 0)),   # x (bf16)
                pl.BlockSpec((chw_p, e_p), lambda t: (0, 0)),      # W_full (bf16)
                pl.BlockSpec((1, e_p), lambda t: (0, 0)),          # bias (f32)
                pl.BlockSpec((tile_b, e_p), lambda t: (t, 0)),     # orig (f32)
            ],
            out_specs=pl.BlockSpec((tile_b, 128), lambda t: (t, 0)),
        ),
        compiler_params=pltpu.CompilerParams(
            dimension_semantics=("parallel",)),
    )(xr, w_full, b_full, orig)

    # Tiny final reduction outside the kernel (parallel per-batch partials).
    return jnp.sum(out[:, 0]) / B


# ----------------------------------------------------------------------------
# Pure-JAX reference: literal upsample -> avgpool -> patches -> synthetic
# encoder -> normalise -> cosine -> mean.  Used as the correctness oracle.
# ----------------------------------------------------------------------------
def reference_loss(recon, orig_features, params, patch_size):
    w_embed, b_embed, w_proj = params
    up = jnp.repeat(jnp.repeat(recon, 7, axis=2), 7, axis=3)
    B, C, Hu, Wu = up.shape
    Ho, Wo = (Hu - 8) // 8 + 1, (Wu - 8) // 8 + 1
    pooled = up[:, :, :Ho * 8, :Wo * 8].reshape(B, C, Ho, 8, Wo, 8).mean(axis=(3, 5))
    n = Ho // patch_size
    patches = pooled.reshape(B, C, n, patch_size, n, patch_size)
    patches = patches.transpose(0, 2, 4, 1, 3, 5).reshape(B, n * n, -1)
    tokens = patches @ w_embed + b_embed
    feat = tokens.mean(axis=1) @ w_proj
    feat = feat / (jnp.linalg.norm(feat, axis=1, keepdims=True) + 1e-8)
    orig = orig_features / (jnp.linalg.norm(orig_features, axis=1, keepdims=True) + 1e-8)
    sim = (feat * orig).sum(axis=1)
    return (1.0 - sim).mean()


if __name__ == "__main__":
    # Small shapes consistent with the module's arithmetic:
    # recon (2, 3, 32, 32) -> upsample x7 -> 224 -> avgpool(8) -> 28
    # patch_size 14 -> 2x2 = 4 patches of dim 3*14*14 = 588
    B, C, H = 2, 3, 32
    PATCH = 14
    WIDTH = 64       # synthetic ViT width (real ViT-B/16: 768)
    EMBED = 32       # synthetic embed dim (real CLIP ViT-B/16: 512)

    key = jax.random.PRNGKey(0)
    k1, k2, k3, k4, k5 = jax.random.split(key, 5)

    recon = jax.random.normal(k1, (B, C, H, H), jnp.float32)
    orig_features = jax.random.normal(k2, (B, EMBED), jnp.float32)

    Dp = C * PATCH * PATCH
    w_embed = jax.random.normal(k3, (Dp, WIDTH), jnp.float32) * (1.0 / np.sqrt(Dp))
    b_embed = jax.random.normal(k4, (1, WIDTH), jnp.float32) * 0.02
    w_proj = jax.random.normal(k5, (WIDTH, EMBED), jnp.float32) * (1.0 / np.sqrt(WIDTH))
    params = (w_embed, b_embed, w_proj)

    loss = clip_loss(recon, orig_features, params, PATCH)
    loss = jax.block_until_ready(loss)

    ref = jax.block_until_ready(reference_loss(recon, orig_features, params, PATCH))
    # bf16 matmul operands (f32 accumulation) + approx reciprocal -> loosened
    # tolerance vs. the literal f32 reference chain.
    np.testing.assert_allclose(np.asarray(loss), np.asarray(ref), rtol=2e-2, atol=2e-2)

    print("KERNEL_OK")
</pallas_src>

<mosaic_0001>
module attributes {stable_mosaic.version = 11 : i64} {
  func.func @_clip_loss_kernel(%arg0: i32, %arg1: memref<16x3072xbf16, #tpu.memory_space<vmem>>, %arg2: memref<3072x128xbf16, #tpu.memory_space<vmem>>, %arg3: memref<1x128xf32, #tpu.memory_space<vmem>>, %arg4: memref<16x128xf32, #tpu.memory_space<vmem>>, %arg5: memref<16x128xf32, #tpu.memory_space<vmem>>) attributes {dimension_semantics = [#tpu.dimension_semantics<parallel>], iteration_bounds = array<i64: 1>, scalar_prefetch = 0 : i64, scratch_operands = 0 : i64, tpu.core_type = #tpu.core_type<tc>, window_params = [{transform_indices = @transform_0, window_bounds = array<i64: 16, 3072>}, {pipeline_mode = #tpu.pipeline_mode<synchronous>, transform_indices = @transform_1, window_bounds = array<i64: 3072, 128>}, {pipeline_mode = #tpu.pipeline_mode<synchronous>, transform_indices = @transform_2, window_bounds = array<i64: 1, 128>}, {transform_indices = @transform_3, window_bounds = array<i64: 16, 128>}, {transform_indices = @transform_4, window_bounds = array<i64: 16, 128>}]} {
    %c0 = arith.constant 0 : index
    %c0_0 = arith.constant 0 : index
    %0 = vector.load %arg1[%c0, %c0_0] : memref<16x3072xbf16, #tpu.memory_space<vmem>>, vector<16x3072xbf16>
    %c0_1 = arith.constant 0 : index
    %c0_2 = arith.constant 0 : index
    %1 = vector.load %arg2[%c0_1, %c0_2] : memref<3072x128xbf16, #tpu.memory_space<vmem>>, vector<3072x128xbf16>
    %cst = arith.constant dense<0.000000e+00> : vector<16x128xf32>
    %2 = tpu.matmul %0, %1, %cst {dimension_numbers = #tpu.dot_dimension_numbers<[1], [0], [0], [1], [0, 0, 1, 1], [], []>} : vector<16x3072xbf16>, vector<3072x128xbf16>, vector<16x128xf32> -> vector<16x128xf32>
    %c0_3 = arith.constant 0 : index
    %c0_4 = arith.constant 0 : index
    %3 = vector.load %arg3[%c0_3, %c0_4] : memref<1x128xf32, #tpu.memory_space<vmem>>, vector<1x128xf32>
    %4 = vector.broadcast %3 : vector<1x128xf32> to vector<16x128xf32>
    %5 = arith.addf %2, %4 : vector<16x128xf32>
    %6 = arith.mulf %5, %5 : vector<16x128xf32>
    %cst_5 = arith.constant dense<0.000000e+00> : vector<16xf32>
    %7 = vector.multi_reduction <add>, %6, %cst_5 [1] : vector<16x128xf32> to vector<16xf32>
    %8 = vector.shape_cast %7 : vector<16xf32> to vector<16x1xf32>
    %9 = math.sqrt %8 : vector<16x1xf32>
    %cst_6 = arith.constant 9.99999993E-9 : f32
    %10 = vector.broadcast %cst_6 : f32 to vector<16x1xf32>
    %11 = arith.addf %9, %10 : vector<16x1xf32>
    %12 = tpu.reciprocal %11 {approx = true} : vector<16x1xf32> -> vector<16x1xf32>
    %13 = vector.broadcast %12 : vector<16x1xf32> to vector<16x128xf32>
    %14 = arith.mulf %5, %13 : vector<16x128xf32>
    %c0_7 = arith.constant 0 : index
    %c0_8 = arith.constant 0 : index
    %15 = vector.load %arg4[%c0_7, %c0_8] : memref<16x128xf32, #tpu.memory_space<vmem>>, vector<16x128xf32>
    %16 = arith.mulf %15, %15 : vector<16x128xf32>
    %cst_9 = arith.constant dense<0.000000e+00> : vector<16xf32>
    %17 = vector.multi_reduction <add>, %16, %cst_9 [1] : vector<16x128xf32> to vector<16xf32>
    %18 = vector.shape_cast %17 : vector<16xf32> to vector<16x1xf32>
    %19 = math.sqrt %18 : vector<16x1xf32>
    %cst_10 = arith.constant 9.99999993E-9 : f32
    %20 = vector.broadcast %cst_10 : f32 to vector<16x1xf32>
    %21 = arith.addf %19, %20 : vector<16x1xf32>
    %22 = tpu.reciprocal %21 {approx = true} : vector<16x1xf32> -> vector<16x1xf32>
    %23 = vector.broadcast %22 : vector<16x1xf32> to vector<16x128xf32>
    %24 = arith.mulf %15, %23 : vector<16x128xf32>
    %25 = arith.mulf %14, %24 : vector<16x128xf32>
    %cst_11 = arith.constant dense<0.000000e+00> : vector<16xf32>
    %26 = vector.multi_reduction <add>, %25, %cst_11 [1] : vector<16x128xf32> to vector<16xf32>
    %27 = vector.shape_cast %26 : vector<16xf32> to vector<16x1xf32>
    %28 = tpu.iota {dimensions = array<i32: 0>} : vector<16x1xi32>
    %c16_i32 = arith.constant 16 : i32
    %29 = arith.muli %arg0, %c16_i32 : i32
    %30 = vector.broadcast %29 : i32 to vector<16x1xi32>
    %31 = arith.addi %28, %30 : vector<16x1xi32>
    %c2_i32 = arith.constant 2 : i32
    %32 = vector.broadcast %c2_i32 : i32 to vector<16x1xi32>
    %33 = arith.cmpi slt, %31, %32 : vector<16x1xi32>
    %cst_12 = arith.constant 1.000000e+00 : f32
    %34 = vector.broadcast %cst_12 : f32 to vector<16x1xf32>
    %35 = arith.subf %34, %27 : vector<16x1xf32>
    %cst_13 = arith.constant 0.000000e+00 : f32
    %36 = vector.broadcast %cst_13 : f32 to vector<16x1xf32>
    %37 = arith.select %33, %35, %36 : vector<16x1xi1>, vector<16x1xf32>
    %38 = vector.shape_cast %37 : vector<16x1xf32> to vector<16x1xf32>
    %39 = vector.broadcast %38 : vector<16x1xf32> to vector<16x128xf32>
    %c0_14 = arith.constant 0 : index
    %c0_15 = arith.constant 0 : index
    %40 = vector.load %arg5[%c0_14, %c0_15] : memref<16x128xf32, #tpu.memory_space<vmem>>, vector<16x128xf32>
    tpu.vector_store %arg5[%c0_14, %c0_15], %39 {strides = array<i32>} : memref<16x128xf32, #tpu.memory_space<vmem>>, vector<16x128xf32>,
    return
  }
  func.func @transform_0(%arg0: i32) -> (i32, i32) {
    %c0_i32 = arith.constant 0 : i32
    %c0_i32_0 = arith.constant 0 : i32
    return %arg0, %c0_i32 : i32, i32
  }
  func.func @transform_1(%arg0: i32) -> (i32, i32) {
    %c0_i32 = arith.constant 0 : i32
    %c0_i32_0 = arith.constant 0 : i32
    %c0_i32_1 = arith.constant 0 : i32
    return %c0_i32, %c0_i32_0 : i32, i32
  }
  func.func @transform_2(%arg0: i32) -> (i32, i32) {
    %c0_i32 = arith.constant 0 : i32
    %c0_i32_0 = arith.constant 0 : i32
    %c0_i32_1 = arith.constant 0 : i32
    return %c0_i32, %c0_i32_0 : i32, i32
  }
  func.func @transform_3(%arg0: i32) -> (i32, i32) {
    %c0_i32 = arith.constant 0 : i32
    %c0_i32_0 = arith.constant 0 : i32
    return %arg0, %c0_i32 : i32, i32
  }
  func.func @transform_4(%arg0: i32) -> (i32, i32) {
    %c0_i32 = arith.constant 0 : i32
    %c0_i32_0 = arith.constant 0 : i32
    return %arg0, %c0_i32 : i32, i32
  }
}

</mosaic_0001>

<llo_original>
// kernel: tpu_custom_call.1
$region0: #{tpu_custom_call.1}
  #allocation0 [shape = 'u32[]', space=smem, size = 0x4, offset = 0x4, fixed_abs, tag = 'smem constant byte address 0x4 - core index']
  #allocation1 [shape = 'u32[144,128]{1,0:T(1,128)}', space=vmem, size = 0x12000, scoped, tag = 'internal scratch']
  %s0 = inlined_call_operand.hbm [shape: bf16[16,3072], index: 0, kind: input, shape index: {}]
  %s1 = inlined_call_operand.hbm [shape: bf16[3072,128], index: 1, kind: input, shape index: {}]
  %s2 = inlined_call_operand.vmem [shape: f32[1,128], index: 2, kind: input, shape index: {}]
  %s3 = inlined_call_operand.hbm [shape: f32[16,128], index: 3, kind: input, shape index: {}]
  %s4 = inlined_call_operand.hbm [shape: f32[16,128], index: 4, kind: output, shape index: {}]
  %s5 = sld [smem:[#allocation0]]
  $region38: #{tpu_custom_call.1} parent=0
    _
  %s7 = ssub.s32 1, %s5
  %s8 = scalar_select 0, %s7, %s5
  $region1: #{tpu_custom_call.1} parent=0
    #allocation2 [shape = 'u8[98304]{0}', space=vmem, size = 0x18000, scoped, tag = 'input window, operand 0, single buffered']
    #allocation3 [shape = 's32[1]{0}', space=sflag, size = 0x4, scoped, tag = 'scoped memory for tpu_custom_call.1']
    #allocation4 [shape = 's32[1]{0}', space=sflag, size = 0x4, scoped, tag = 'scoped memory for tpu_custom_call.1']
    #allocation5 [shape = 'u8[786432]{0}', space=vmem, size = 0xc0000, scoped, tag = 'input window, operand 1, single buffered']
    #allocation6 [shape = 's32[1]{0}', space=sflag, size = 0x4, scoped, tag = 'scoped memory for tpu_custom_call.1']
    #allocation7 [shape = 'u8[8192]{0}', space=vmem, size = 0x2000, scoped, tag = 'input window, operand 3, single buffered']
    #allocation8 [shape = 'u8[8192]{0}', space=vmem, size = 0x2000, scoped, tag = 'output window, operand 0, single buffered']
    %9 = vsyncpa [#allocation3], 0
    %10 = vsyncpa [#allocation6], 0
    %11 = vsyncpa [#allocation4], 0
    // Predicated region
    $region2: #{tpu_custom_call.1} parent=1 // pred_check
      _
    $region3: #{tpu_custom_call.1} parent=1 // pred_check_branch
      %13 = sbr.rel (0) target = $region5
    $region4: #{tpu_custom_call.1} parent=1 // pred_region
      %s15 = ssub.s32 3072, 3072
      %16 = vsyncadd [#allocation3], %s15
      %s17 = sshll.u32 [#allocation2], 4
      %s18 = int_to_ptr.vmem [resolvable:$true] %s17
      %23 = dma.hbm_to_vmem [thread:$0]  %s0, 3072, %s18, [#allocation3], 1536, 1536, 96
    $region5: #{tpu_custom_call.1} parent=1 // pred_fallthru
      _
    // Predicated region
    $region6: #{tpu_custom_call.1} parent=1 // pred_check
      _
    $region7: #{tpu_custom_call.1} parent=1 // pred_check_branch
      %25 = sbr.rel (0) target = $region9
    $region8: #{tpu_custom_call.1} parent=1 // pred_region
      %s27 = ssub.s32 24576, 24576
      %28 = vsyncadd [#allocation6], %s27
      %s29 = sshll.u32 [#allocation5], 4
      %s30 = int_to_ptr.vmem [resolvable:$true] %s29
      %35 = dma.hbm_to_vmem [thread:$0]  %s1, 24576, %s30, [#allocation6], 64, 64, 4
    $region9: #{tpu_custom_call.1} parent=1 // pred_fallthru
      _
    // Predicated region
    $region10: #{tpu_custom_call.1} parent=1 // pred_check
      _
    $region11: #{tpu_custom_call.1} parent=1 // pred_check_branch
      %37 = sbr.rel (0) target = $region13
    $region12: #{tpu_custom_call.1} parent=1 // pred_region
      _
    $region13: #{tpu_custom_call.1} parent=1 // pred_fallthru
      _
    // Predicated region
    $region14: #{tpu_custom_call.1} parent=1 // pred_check
      _
    $region15: #{tpu_custom_call.1} parent=1 // pred_check_branch
      %39 = sbr.rel (0) target = $region17
    $region16: #{tpu_custom_call.1} parent=1 // pred_region
      %s41 = ssub.s32 256, 256
      %42 = vsyncadd [#allocation6], %s41
      %s43 = sshll.u32 [#allocation7], 4
      %s44 = int_to_ptr.vmem [resolvable:$true] %s43
      %49 = dma.hbm_to_vmem [thread:$0]  %s3, 256, %s44, [#allocation6], 128, 128, 8
    $region17: #{tpu_custom_call.1} parent=1 // pred_fallthru
      _
    // Predicated region
    $region18: #{tpu_custom_call.1} parent=1 // pred_check
      _
    $region19: #{tpu_custom_call.1} parent=1 // pred_check_branch
      %51 = sbr.rel (0) target = $region21
    $region20: #{tpu_custom_call.1} parent=1 // pred_region
      %52 = dma.done [#allocation3], 3072
    $region21: #{tpu_custom_call.1} parent=1 // pred_fallthru
      _
    // Predicated region
    $region22: #{tpu_custom_call.1} parent=1 // pred_check
      _
    $region23: #{tpu_custom_call.1} parent=1 // pred_check_branch
      %54 = sbr.rel (0) target = $region25
    $region24: #{tpu_custom_call.1} parent=1 // pred_region
      %55 = dma.done [#allocation6], 24576
    $region25: #{tpu_custom_call.1} parent=1 // pred_fallthru
      _
    // Predicated region
    $region26: #{tpu_custom_call.1} parent=1 // pred_check
      _
    $region27: #{tpu_custom_call.1} parent=1 // pred_check_branch
      %57 = sbr.rel (0) target = $region29
    $region28: #{tpu_custom_call.1} parent=1 // pred_region
      %58 = dma.done [#allocation6], 256
    $region29: #{tpu_custom_call.1} parent=1 // pred_fallthru
      _
    %v60 = vld [vmem:[#allocation2] sm:$0xff]
    %v61 = vld [vmem:[#allocation2 + $0x8] sm:$0xff]
    %v62 = vld [vmem:[#allocation2 + $0x10] sm:$0xff]
    %v63 = vld [vmem:[#allocation2 + $0x18] sm:$0xff]
    %v64 = vld [vmem:[#allocation2 + $0x20] sm:$0xff]
    %v65 = vld [vmem:[#allocation2 + $0x28] sm:$0xff]
    %v66 = vld [vmem:[#allocation2 + $0x30] sm:$0xff]
    %v67 = vld [vmem:[#allocation2 + $0x38] sm:$0xff]
    %v68 = vld [vmem:[#allocation2 + $0x40] sm:$0xff]
    %v69 = vld [vmem:[#allocation2 + $0x48] sm:$0xff]
    %v70 = vld [vmem:[#allocation2 + $0x50] sm:$0xff]
    %v71 = vld [vmem:[#allocation2 + $0x58] sm:$0xff]
    %v72 = vld [vmem:[#allocation2 + $0x60] sm:$0xff]
    %v73 = vld [vmem:[#allocation2 + $0x68] sm:$0xff]
    %v74 = vld [vmem:[#allocation2 + $0x70] sm:$0xff]
    %v75 = vld [vmem:[#allocation2 + $0x78] sm:$0xff]
    %v76 = vld [vmem:[#allocation2 + $0x80] sm:$0xff]
    %v77 = vld [vmem:[#allocation2 + $0x88] sm:$0xff]
    %v78 = vld [vmem:[#allocation2 + $0x90] sm:$0xff]
    %v79 = vld [vmem:[#allocation2 + $0x98] sm:$0xff]
    %v80 = vld [vmem:[#allocation2 + $0xa0] sm:$0xff]
    %v81 = vld [vmem:[#allocation2 + $0xa8] sm:$0xff]
    %v82 = vld [vmem:[#allocation2 + $0xb0] sm:$0xff]
    %v83 = vld [vmem:[#allocation2 + $0xb8] sm:$0xff]
    %v84 = vld [vmem:[#allocation5] sm:$0xf]
    %v85 = vld [vmem:[#allocation5 + $0x4] sm:$0xf]
    %v86 = vld [vmem:[#allocation5 + $0x8] sm:$0xf]
    %v87 = vld [vmem:[#allocation5 + $0xc] sm:$0xf]
    %v88 = vld [vmem:[#allocation5 + $0x10] sm:$0xf]
    %v89 = vld [vmem:[#allocation5 + $0x14] sm:$0xf]
    %v90 = vld [vmem:[#allocation5 + $0x18] sm:$0xf]
    %v91 = vld [vmem:[#allocation5 + $0x1c] sm:$0xf]
    %v92 = vld [vmem:[#allocation5 + $0x20] sm:$0xf]
    %v93 = vld [vmem:[#allocation5 + $0x24] sm:$0xf]
    %v94 = vld [vmem:[#allocation5 + $0x28] sm:$0xf]
    %v95 = vld [vmem:[#allocation5 + $0x2c] sm:$0xf]
    %v96 = vld [vmem:[#allocation5 + $0x30] sm:$0xf]
    %v97 = vld [vmem:[#allocation5 + $0x34] sm:$0xf]
    %v98 = vld [vmem:[#allocation5 + $0x38] sm:$0xf]
    %v99 = vld [vmem:[#allocation5 + $0x3c] sm:$0xf]
    %v100 = vld [vmem:[#allocation5 + $0x40] sm:$0xf]
    %v101 = vld [vmem:[#allocation5 + $0x44] sm:$0xf]
    %v102 = vld [vmem:[#allocation5 + $0x48] sm:$0xf]
    %v103 = vld [vmem:[#allocation5 + $0x4c] sm:$0xf]
    %v104 = vld [vmem:[#allocation5 + $0x50] sm:$0xf]
    %v105 = vld [vmem:[#allocation5 + $0x54] sm:$0xf]
    %v106 = vld [vmem:[#allocation5 + $0x58] sm:$0xf]
    %v107 = vld [vmem:[#allocation5 + $0x5c] sm:$0xf]
    %v108 = vld [vmem:[#allocation5 + $0x60] sm:$0xf]
    %v109 = vld [vmem:[#allocation5 + $0x64] sm:$0xf]
    %v110 = vld [vmem:[#allocation5 + $0x68] sm:$0xf]
    %v111 = vld [vmem:[#allocation5 + $0x6c] sm:$0xf]
    %v112 = vld [vmem:[#allocation5 + $0x70] sm:$0xf]
    %v113 = vld [vmem:[#allocation5 + $0x74] sm:$0xf]
    %v114 = vld [vmem:[#allocation5 + $0x78] sm:$0xf]
    %v115 = vld [vmem:[#allocation5 + $0x7c] sm:$0xf]
    %v116 = vld [vmem:[#allocation5 + $0x80] sm:$0xf]
    %v117 = vld [vmem:[#allocation5 + $0x84] sm:$0xf]
    %v118 = vld [vmem:[#allocation5 + $0x88] sm:$0xf]
    %v119 = vld [vmem:[#allocation5 + $0x8c] sm:$0xf]
    %v120 = vld [vmem:[#allocation5 + $0x90] sm:$0xf]
    %v121 = vld [vmem:[#allocation5 + $0x94] sm:$0xf]
    %v122 = vld [vmem:[#allocation5 + $0x98] sm:$0xf]
    %v123 = vld [vmem:[#allocation5 + $0x9c] sm:$0xf]
    %v124 = vld [vmem:[#allocation5 + $0xa0] sm:$0xf]
    %v125 = vld [vmem:[#allocation5 + $0xa4] sm:$0xf]
    %v126 = vld [vmem:[#allocation5 + $0xa8] sm:$0xf]
    %v127 = vld [vmem:[#allocation5 + $0xac] sm:$0xf]
    %v128 = vld [vmem:[#allocation5 + $0xb0] sm:$0xf]
    %v129 = vld [vmem:[#allocation5 + $0xb4] sm:$0xf]
    %v130 = vld [vmem:[#allocation5 + $0xb8] sm:$0xf]
    %v131 = vld [vmem:[#allocation5 + $0xbc] sm:$0xf]
    %v132 = vld [vmem:[#allocation5 + $0xc0] sm:$0xf]
    %v133 = vld [vmem:[#allocation5 + $0xc4] sm:$0xf]
    %v134 = vld [vmem:[#allocation5 + $0xc8] sm:$0xf]
    %v135 = vld [vmem:[#allocation5 + $0xcc] sm:$0xf]
    %v136 = vld [vmem:[#allocation5 + $0xd0] sm:$0xf]
    %v137 = vld [vmem:[#allocation5 + $0xd4] sm:$0xf]
    %v138 = vld [vmem:[#allocation5 + $0xd8] sm:$0xf]
    %v139 = vld [vmem:[#allocation5 + $0xdc] sm:$0xf]
    %v140 = vld [vmem:[#allocation5 + $0xe0] sm:$0xf]
    %v141 = vld [vmem:[#allocation5 + $0xe4] sm:$0xf]
    %v142 = vld [vmem:[#allocation5 + $0xe8] sm:$0xf]
    %v143 = vld [vmem:[#allocation5 + $0xec] sm:$0xf]
    %v144 = vld [vmem:[#allocation5 + $0xf0] sm:$0xf]
    %v145 = vld [vmem:[#allocation5 + $0xf4] sm:$0xf]
    %v146 = vld [vmem:[#allocation5 + $0xf8] sm:$0xf]
    %v147 = vld [vmem:[#allocation5 + $0xfc] sm:$0xf]
    %v148 = vld [vmem:[#allocation5 + $0x100] sm:$0xf]
    %v149 = vld [vmem:[#allocation5 + $0x104] sm:$0xf]
    %v150 = vld [vmem:[#allocation5 + $0x108] sm:$0xf]
    %v151 = vld [vmem:[#allocation5 + $0x10c] sm:$0xf]
    %v152 = vld [vmem:[#allocation5 + $0x110] sm:$0xf]
    %v153 = vld [vmem:[#allocation5 + $0x114] sm:$0xf]
    %v154 = vld [vmem:[#allocation5 + $0x118] sm:$0xf]
    %v155 = vld [vmem:[#allocation5 + $0x11c] sm:$0xf]
    %v156 = vld [vmem:[#allocation5 + $0x120] sm:$0xf]
    %v157 = vld [vmem:[#allocation5 + $0x124] sm:$0xf]
    %v158 = vld [vmem:[#allocation5 + $0x128] sm:$0xf]
    %v159 = vld [vmem:[#allocation5 + $0x12c] sm:$0xf]
    %v160 = vld [vmem:[#allocation5 + $0x130] sm:$0xf]
    %v161 = vld [vmem:[#allocation5 + $0x134] sm:$0xf]
    %v162 = vld [vmem:[#allocation5 + $0x138] sm:$0xf]
    %v163 = vld [vmem:[#allocation5 + $0x13c] sm:$0xf]
    %v164 = vld [vmem:[#allocation5 + $0x140] sm:$0xf]
    %v165 = vld [vmem:[#allocation5 + $0x144] sm:$0xf]
    %v166 = vld [vmem:[#allocation5 + $0x148] sm:$0xf]
    %v167 = vld [vmem:[#allocation5 + $0x14c] sm:$0xf]
    %v168 = vld [vmem:[#allocation5 + $0x150] sm:$0xf]
    %v169 = vld [vmem:[#allocation5 + $0x154] sm:$0xf]
    %v170 = vld [vmem:[#allocation5 + $0x158] sm:$0xf]
    %v171 = vld [vmem:[#allocation5 + $0x15c] sm:$0xf]
    %v172 = vld [vmem:[#allocation5 + $0x160] sm:$0xf]
    %v173 = vld [vmem:[#allocation5 + $0x164] sm:$0xf]
    %v174 = vld [vmem:[#allocation5 + $0x168] sm:$0xf]
    %v175 = vld [vmem:[#allocation5 + $0x16c] sm:$0xf]
    %v176 = vld [vmem:[#allocation5 + $0x170] sm:$0xf]
    %v177 = vld [vmem:[#allocation5 + $0x174] sm:$0xf]
    %v178 = vld [vmem:[#allocation5 + $0x178] sm:$0xf]
    %v179 = vld [vmem:[#allocation5 + $0x17c] sm:$0xf]
    %v180 = vld [vmem:[#allocation5 + $0x180] sm:$0xf]
    %v181 = vld [vmem:[#allocation5 + $0x184] sm:$0xf]
    %v182 = vld [vmem:[#allocation5 + $0x188] sm:$0xf]
    %v183 = vld [vmem:[#allocation5 + $0x18c] sm:$0xf]
    %v184 = vld [vmem:[#allocation5 + $0x190] sm:$0xf]
    %v185 = vld [vmem:[#allocation5 + $0x194] sm:$0xf]
    %v186 = vld [vmem:[#allocation5 + $0x198] sm:$0xf]
    %v187 = vld [vmem:[#allocation5 + $0x19c] sm:$0xf]
    %v188 = vld [vmem:[#allocation5 + $0x1a0] sm:$0xf]
    %v189 = vld [vmem:[#allocation5 + $0x1a4] sm:$0xf]
    %v190 = vld [vmem:[#allocation5 + $0x1a8] sm:$0xf]
    %v191 = vld [vmem:[#allocation5 + $0x1ac] sm:$0xf]
    %v192 = vld [vmem:[#allocation5 + $0x1b0] sm:$0xf]
    %v193 = vld [vmem:[#allocation5 + $0x1b4] sm:$0xf]
    %v194 = vld [vmem:[#allocation5 + $0x1b8] sm:$0xf]
    %v195 = vld [vmem:[#allocation5 + $0x1bc] sm:$0xf]
    %v196 = vld [vmem:[#allocation5 + $0x1c0] sm:$0xf]
    %v197 = vld [vmem:[#allocation5 + $0x1c4] sm:$0xf]
    %v198 = vld [vmem:[#allocation5 + $0x1c8] sm:$0xf]
    %v199 = vld [vmem:[#allocation5 + $0x1cc] sm:$0xf]
    %v200 = vld [vmem:[#allocation5 + $0x1d0] sm:$0xf]
    %v201 = vld [vmem:[#allocation5 + $0x1d4] sm:$0xf]
    %v202 = vld [vmem:[#allocation5 + $0x1d8] sm:$0xf]
    %v203 = vld [vmem:[#allocation5 + $0x1dc] sm:$0xf]
    %v204 = vld [vmem:[#allocation5 + $0x1e0] sm:$0xf]
    %v205 = vld [vmem:[#allocation5 + $0x1e4] sm:$0xf]
    %v206 = vld [vmem:[#allocation5 + $0x1e8] sm:$0xf]
    %v207 = vld [vmem:[#allocation5 + $0x1ec] sm:$0xf]
    %v208 = vld [vmem:[#allocation5 + $0x1f0] sm:$0xf]
    %v209 = vld [vmem:[#allocation5 + $0x1f4] sm:$0xf]
    %v210 = vld [vmem:[#allocation5 + $0x1f8] sm:$0xf]
    %v211 = vld [vmem:[#allocation5 + $0x1fc] sm:$0xf]
    %v212 = vld [vmem:[#allocation5 + $0x200] sm:$0xf]
    %v213 = vld [vmem:[#allocation5 + $0x204] sm:$0xf]
    %v214 = vld [vmem:[#allocation5 + $0x208] sm:$0xf]
    %v215 = vld [vmem:[#allocation5 + $0x20c] sm:$0xf]
    %v216 = vld [vmem:[#allocation5 + $0x210] sm:$0xf]
    %v217 = vld [vmem:[#allocation5 + $0x214] sm:$0xf]
    %v218 = vld [vmem:[#allocation5 + $0x218] sm:$0xf]
    %v219 = vld [vmem:[#allocation5 + $0x21c] sm:$0xf]
    %v220 = vld [vmem:[#allocation5 + $0x220] sm:$0xf]
    %v221 = vld [vmem:[#allocation5 + $0x224] sm:$0xf]
    %v222 = vld [vmem:[#allocation5 + $0x228] sm:$0xf]
    %v223 = vld [vmem:[#allocation5 + $0x22c] sm:$0xf]
    %v224 = vld [vmem:[#allocation5 + $0x230] sm:$0xf]
    %v225 = vld [vmem:[#allocation5 + $0x234] sm:$0xf]
    %v226 = vld [vmem:[#allocation5 + $0x238] sm:$0xf]
    %v227 = vld [vmem:[#allocation5 + $0x23c] sm:$0xf]
    %v228 = vld [vmem:[#allocation5 + $0x240] sm:$0xf]
    %v229 = vld [vmem:[#allocation5 + $0x244] sm:$0xf]
    %v230 = vld [vmem:[#allocation5 + $0x248] sm:$0xf]
    %v231 = vld [vmem:[#allocation5 + $0x24c] sm:$0xf]
    %v232 = vld [vmem:[#allocation5 + $0x250] sm:$0xf]
    %v233 = vld [vmem:[#allocation5 + $0x254] sm:$0xf]
    %v234 = vld [vmem:[#allocation5 + $0x258] sm:$0xf]
    %v235 = vld [vmem:[#allocation5 + $0x25c] sm:$0xf]
    %v236 = vld [vmem:[#allocation5 + $0x260] sm:$0xf]
    %v237 = vld [vmem:[#allocation5 + $0x264] sm:$0xf]
    %v238 = vld [vmem:[#allocation5 + $0x268] sm:$0xf]
    %v239 = vld [vmem:[#allocation5 + $0x26c] sm:$0xf]
    %v240 = vld [vmem:[#allocation5 + $0x270] sm:$0xf]
    %v241 = vld [vmem:[#allocation5 + $0x274] sm:$0xf]
    %v242 = vld [vmem:[#allocation5 + $0x278] sm:$0xf]
    %v243 = vld [vmem:[#allocation5 + $0x27c] sm:$0xf]
    %v244 = vld [vmem:[#allocation5 + $0x280] sm:$0xf]
    %v245 = vld [vmem:[#allocation5 + $0x284] sm:$0xf]
    %v246 = vld [vmem:[#allocation5 + $0x288] sm:$0xf]
    %v247 = vld [vmem:[#allocation5 + $0x28c] sm:$0xf]
    %v248 = vld [vmem:[#allocation5 + $0x290] sm:$0xf]
    %v249 = vld [vmem:[#allocation5 + $0x294] sm:$0xf]
    %v250 = vld [vmem:[#allocation5 + $0x298] sm:$0xf]
    %v251 = vld [vmem:[#allocation5 + $0x29c] sm:$0xf]
    %v252 = vld [vmem:[#allocation5 + $0x2a0] sm:$0xf]
    %v253 = vld [vmem:[#allocation5 + $0x2a4] sm:$0xf]
    %v254 = vld [vmem:[#allocation5 + $0x2a8] sm:$0xf]
    %v255 = vld [vmem:[#allocation5 + $0x2ac] sm:$0xf]
    %v256 = vld [vmem:[#allocation5 + $0x2b0] sm:$0xf]
    %v257 = vld [vmem:[#allocation5 + $0x2b4] sm:$0xf]
    %v258 = vld [vmem:[#allocation5 + $0x2b8] sm:$0xf]
    %v259 = vld [vmem:[#allocation5 + $0x2bc] sm:$0xf]
    %v260 = vld [vmem:[#allocation5 + $0x2c0] sm:$0xf]
    %v261 = vld [vmem:[#allocation5 + $0x2c4] sm:$0xf]
    %v262 = vld [vmem:[#allocation5 + $0x2c8] sm:$0xf]
    %v263 = vld [vmem:[#allocation5 + $0x2cc] sm:$0xf]
    %v264 = vld [vmem:[#allocation5 + $0x2d0] sm:$0xf]
    %v265 = vld [vmem:[#allocation5 + $0x2d4] sm:$0xf]
    %v266 = vld [vmem:[#allocation5 + $0x2d8] sm:$0xf]
    %v267 = vld [vmem:[#allocation5 + $0x2dc] sm:$0xf]
    %v268 = vld [vmem:[#allocation5 + $0x2e0] sm:$0xf]
    %v269 = vld [vmem:[#allocation5 + $0x2e4] sm:$0xf]
    %v270 = vld [vmem:[#allocation5 + $0x2e8] sm:$0xf]
    %v271 = vld [vmem:[#allocation5 + $0x2ec] sm:$0xf]
    %v272 = vld [vmem:[#allocation5 + $0x2f0] sm:$0xf]
    %v273 = vld [vmem:[#allocation5 + $0x2f4] sm:$0xf]
    %v274 = vld [vmem:[#allocation5 + $0x2f8] sm:$0xf]
    %v275 = vld [vmem:[#allocation5 + $0x2fc] sm:$0xf]
    %v276 = vld [vmem:[#allocation5 + $0x300] sm:$0xf]
    %v277 = vld [vmem:[#allocation5 + $0x304] sm:$0xf]
    %v278 = vld [vmem:[#allocation5 + $0x308] sm:$0xf]
    %v279 = vld [vmem:[#allocation5 + $0x30c] sm:$0xf]
    %v280 = vld [vmem:[#allocation5 + $0x310] sm:$0xf]
    %v281 = vld [vmem:[#allocation5 + $0x314] sm:$0xf]
    %v282 = vld [vmem:[#allocation5 + $0x318] sm:$0xf]
    %v283 = vld [vmem:[#allocation5 + $0x31c] sm:$0xf]
    %v284 = vld [vmem:[#allocation5 + $0x320] sm:$0xf]
    %v285 = vld [vmem:[#allocation5 + $0x324] sm:$0xf]
    %v286 = vld [vmem:[#allocation5 + $0x328] sm:$0xf]
    %v287 = vld [vmem:[#allocation5 + $0x32c] sm:$0xf]
    %v288 = vld [vmem:[#allocation5 + $0x330] sm:$0xf]
    %v289 = vld [vmem:[#allocation5 + $0x334] sm:$0xf]
    %v290 = vld [vmem:[#allocation5 + $0x338] sm:$0xf]
    %v291 = vld [vmem:[#allocation5 + $0x33c] sm:$0xf]
    %v292 = vld [vmem:[#allocation5 + $0x340] sm:$0xf]
    %v293 = vld [vmem:[#allocation5 + $0x344] sm:$0xf]
    %v294 = vld [vmem:[#allocation5 + $0x348] sm:$0xf]
    %v295 = vld [vmem:[#allocation5 + $0x34c] sm:$0xf]
    %v296 = vld [vmem:[#allocation5 + $0x350] sm:$0xf]
    %v297 = vld [vmem:[#allocation5 + $0x354] sm:$0xf]
    %v298 = vld [vmem:[#allocation5 + $0x358] sm:$0xf]
    %v299 = vld [vmem:[#allocation5 + $0x35c] sm:$0xf]
    %v300 = vld [vmem:[#allocation5 + $0x360] sm:$0xf]
    %v301 = vld [vmem:[#allocation5 + $0x364] sm:$0xf]
    %v302 = vld [vmem:[#allocation5 + $0x368] sm:$0xf]
    %v303 = vld [vmem:[#allocation5 + $0x36c] sm:$0xf]
    %v304 = vld [vmem:[#allocation5 + $0x370] sm:$0xf]
    %v305 = vld [vmem:[#allocation5 + $0x374] sm:$0xf]
    %v306 = vld [vmem:[#allocation5 + $0x378] sm:$0xf]
    %v307 = vld [vmem:[#allocation5 + $0x37c] sm:$0xf]
    %v308 = vld [vmem:[#allocation5 + $0x380] sm:$0xf]
    %v309 = vld [vmem:[#allocation5 + $0x384] sm:$0xf]
    %v310 = vld [vmem:[#allocation5 + $0x388] sm:$0xf]
    %v311 = vld [vmem:[#allocation5 + $0x38c] sm:$0xf]
    %v312 = vld [vmem:[#allocation5 + $0x390] sm:$0xf]
    %v313 = vld [vmem:[#allocation5 + $0x394] sm:$0xf]
    %v314 = vld [vmem:[#allocation5 + $0x398] sm:$0xf]
    %v315 = vld [vmem:[#allocation5 + $0x39c] sm:$0xf]
    %v316 = vld [vmem:[#allocation5 + $0x3a0] sm:$0xf]
    %v317 = vld [vmem:[#allocation5 + $0x3a4] sm:$0xf]
    %v318 = vld [vmem:[#allocation5 + $0x3a8] sm:$0xf]
    %v319 = vld [vmem:[#allocation5 + $0x3ac] sm:$0xf]
    %v320 = vld [vmem:[#allocation5 + $0x3b0] sm:$0xf]
    %v321 = vld [vmem:[#allocation5 + $0x3b4] sm:$0xf]
    %v322 = vld [vmem:[#allocation5 + $0x3b8] sm:$0xf]
    %v323 = vld [vmem:[#allocation5 + $0x3bc] sm:$0xf]
    %v324 = vld [vmem:[#allocation5 + $0x3c0] sm:$0xf]
    %v325 = vld [vmem:[#allocation5 + $0x3c4] sm:$0xf]
    %v326 = vld [vmem:[#allocation5 + $0x3c8] sm:$0xf]
    %v327 = vld [vmem:[#allocation5 + $0x3cc] sm:$0xf]
    %v328 = vld [vmem:[#allocation5 + $0x3d0] sm:$0xf]
    %v329 = vld [vmem:[#allocation5 + $0x3d4] sm:$0xf]
    %v330 = vld [vmem:[#allocation5 + $0x3d8] sm:$0xf]
    %v331 = vld [vmem:[#allocation5 + $0x3dc] sm:$0xf]
    %v332 = vld [vmem:[#allocation5 + $0x3e0] sm:$0xf]
    %v333 = vld [vmem:[#allocation5 + $0x3e4] sm:$0xf]
    %v334 = vld [vmem:[#allocation5 + $0x3e8] sm:$0xf]
    %v335 = vld [vmem:[#allocation5 + $0x3ec] sm:$0xf]
    %v336 = vld [vmem:[#allocation5 + $0x3f0] sm:$0xf]
    %v337 = vld [vmem:[#allocation5 + $0x3f4] sm:$0xf]
    %v338 = vld [vmem:[#allocation5 + $0x3f8] sm:$0xf]
    %v339 = vld [vmem:[#allocation5 + $0x3fc] sm:$0xf]
    %v340 = vld [vmem:[#allocation5 + $0x400] sm:$0xf]
    %v341 = vld [vmem:[#allocation5 + $0x404] sm:$0xf]
    %v342 = vld [vmem:[#allocation5 + $0x408] sm:$0xf]
    %v343 = vld [vmem:[#allocation5 + $0x40c] sm:$0xf]
    %v344 = vld [vmem:[#allocation5 + $0x410] sm:$0xf]
    %v345 = vld [vmem:[#allocation5 + $0x414] sm:$0xf]
    %v346 = vld [vmem:[#allocation5 + $0x418] sm:$0xf]
    %v347 = vld [vmem:[#allocation5 + $0x41c] sm:$0xf]
    %v348 = vld [vmem:[#allocation5 + $0x420] sm:$0xf]
    %v349 = vld [vmem:[#allocation5 + $0x424] sm:$0xf]
    %v350 = vld [vmem:[#allocation5 + $0x428] sm:$0xf]
    %v351 = vld [vmem:[#allocation5 + $0x42c] sm:$0xf]
    %v352 = vld [vmem:[#allocation5 + $0x430] sm:$0xf]
    %v353 = vld [vmem:[#allocation5 + $0x434] sm:$0xf]
    %v354 = vld [vmem:[#allocation5 + $0x438] sm:$0xf]
    %v355 = vld [vmem:[#allocation5 + $0x43c] sm:$0xf]
    %v356 = vld [vmem:[#allocation5 + $0x440] sm:$0xf]
    %v357 = vld [vmem:[#allocation5 + $0x444] sm:$0xf]
    %v358 = vld [vmem:[#allocation5 + $0x448] sm:$0xf]
    %v359 = vld [vmem:[#allocation5 + $0x44c] sm:$0xf]
    %v360 = vld [vmem:[#allocation5 + $0x450] sm:$0xf]
    %v361 = vld [vmem:[#allocation5 + $0x454] sm:$0xf]
    %v362 = vld [vmem:[#allocation5 + $0x458] sm:$0xf]
    %v363 = vld [vmem:[#allocation5 + $0x45c] sm:$0xf]
    %v364 = vld [vmem:[#allocation5 + $0x460] sm:$0xf]
    %v365 = vld [vmem:[#allocation5 + $0x464] sm:$0xf]
    %v366 = vld [vmem:[#allocation5 + $0x468] sm:$0xf]
    %v367 = vld [vmem:[#allocation5 + $0x46c] sm:$0xf]
    %v368 = vld [vmem:[#allocation5 + $0x470] sm:$0xf]
    %v369 = vld [vmem:[#allocation5 + $0x474] sm:$0xf]
    %v370 = vld [vmem:[#allocation5 + $0x478] sm:$0xf]
    %v371 = vld [vmem:[#allocation5 + $0x47c] sm:$0xf]
    %v372 = vld [vmem:[#allocation5 + $0x480] sm:$0xf]
    %v373 = vld [vmem:[#allocation5 + $0x484] sm:$0xf]
    %v374 = vld [vmem:[#allocation5 + $0x488] sm:$0xf]
    %v375 = vld [vmem:[#allocation5 + $0x48c] sm:$0xf]
    %v376 = vld [vmem:[#allocation5 + $0x490] sm:$0xf]
    %v377 = vld [vmem:[#allocation5 + $0x494] sm:$0xf]
    %v378 = vld [vmem:[#allocation5 + $0x498] sm:$0xf]
    %v379 = vld [vmem:[#allocation5 + $0x49c] sm:$0xf]
    %v380 = vld [vmem:[#allocation5 + $0x4a0] sm:$0xf]
    %v381 = vld [vmem:[#allocation5 + $0x4a4] sm:$0xf]
    %v382 = vld [vmem:[#allocation5 + $0x4a8] sm:$0xf]
    %v383 = vld [vmem:[#allocation5 + $0x4ac] sm:$0xf]
    %v384 = vld [vmem:[#allocation5 + $0x4b0] sm:$0xf]
    %v385 = vld [vmem:[#allocation5 + $0x4b4] sm:$0xf]
    %v386 = vld [vmem:[#allocation5 + $0x4b8] sm:$0xf]
    %v387 = vld [vmem:[#allocation5 + $0x4bc] sm:$0xf]
    %v388 = vld [vmem:[#allocation5 + $0x4c0] sm:$0xf]
    %v389 = vld [vmem:[#allocation5 + $0x4c4] sm:$0xf]
    %v390 = vld [vmem:[#allocation5 + $0x4c8] sm:$0xf]
    %v391 = vld [vmem:[#allocation5 + $0x4cc] sm:$0xf]
    %v392 = vld [vmem:[#allocation5 + $0x4d0] sm:$0xf]
    %v393 = vld [vmem:[#allocation5 + $0x4d4] sm:$0xf]
    %v394 = vld [vmem:[#allocation5 + $0x4d8] sm:$0xf]
    %v395 = vld [vmem:[#allocation5 + $0x4dc] sm:$0xf]
    %v396 = vld [vmem:[#allocation5 + $0x4e0] sm:$0xf]
    %v397 = vld [vmem:[#allocation5 + $0x4e4] sm:$0xf]
    %v398 = vld [vmem:[#allocation5 + $0x4e8] sm:$0xf]
    %v399 = vld [vmem:[#allocation5 + $0x4ec] sm:$0xf]
    %v400 = vld [vmem:[#allocation5 + $0x4f0] sm:$0xf]
    %v401 = vld [vmem:[#allocation5 + $0x4f4] sm:$0xf]
    %v402 = vld [vmem:[#allocation5 + $0x4f8] sm:$0xf]
    %v403 = vld [vmem:[#allocation5 + $0x4fc] sm:$0xf]
    %v404 = vld [vmem:[#allocation5 + $0x500] sm:$0xf]
    %v405 = vld [vmem:[#allocation5 + $0x504] sm:$0xf]
    %v406 = vld [vmem:[#allocation5 + $0x508] sm:$0xf]
    %v407 = vld [vmem:[#allocation5 + $0x50c] sm:$0xf]
    %v408 = vld [vmem:[#allocation5 + $0x510] sm:$0xf]
    %v409 = vld [vmem:[#allocation5 + $0x514] sm:$0xf]
    %v410 = vld [vmem:[#allocation5 + $0x518] sm:$0xf]
    %v411 = vld [vmem:[#allocation5 + $0x51c] sm:$0xf]
    %v412 = vld [vmem:[#allocation5 + $0x520] sm:$0xf]
    %v413 = vld [vmem:[#allocation5 + $0x524] sm:$0xf]
    %v414 = vld [vmem:[#allocation5 + $0x528] sm:$0xf]
    %v415 = vld [vmem:[#allocation5 + $0x52c] sm:$0xf]
    %v416 = vld [vmem:[#allocation5 + $0x530] sm:$0xf]
    %v417 = vld [vmem:[#allocation5 + $0x534] sm:$0xf]
    %v418 = vld [vmem:[#allocation5 + $0x538] sm:$0xf]
    %v419 = vld [vmem:[#allocation5 + $0x53c] sm:$0xf]
    %v420 = vld [vmem:[#allocation5 + $0x540] sm:$0xf]
    %v421 = vld [vmem:[#allocation5 + $0x544] sm:$0xf]
    %v422 = vld [vmem:[#allocation5 + $0x548] sm:$0xf]
    %v423 = vld [vmem:[#allocation5 + $0x54c] sm:$0xf]
    %v424 = vld [vmem:[#allocation5 + $0x550] sm:$0xf]
    %v425 = vld [vmem:[#allocation5 + $0x554] sm:$0xf]
    %v426 = vld [vmem:[#allocation5 + $0x558] sm:$0xf]
    %v427 = vld [vmem:[#allocation5 + $0x55c] sm:$0xf]
    %v428 = vld [vmem:[#allocation5 + $0x560] sm:$0xf]
    %v429 = vld [vmem:[#allocation5 + $0x564] sm:$0xf]
    %v430 = vld [vmem:[#allocation5 + $0x568] sm:$0xf]
    %v431 = vld [vmem:[#allocation5 + $0x56c] sm:$0xf]
    %v432 = vld [vmem:[#allocation5 + $0x570] sm:$0xf]
    %v433 = vld [vmem:[#allocation5 + $0x574] sm:$0xf]
    %v434 = vld [vmem:[#allocation5 + $0x578] sm:$0xf]
    %v435 = vld [vmem:[#allocation5 + $0x57c] sm:$0xf]
    %v436 = vld [vmem:[#allocation5 + $0x580] sm:$0xf]
    %v437 = vld [vmem:[#allocation5 + $0x584] sm:$0xf]
    %v438 = vld [vmem:[#allocation5 + $0x588] sm:$0xf]
    %v439 = vld [vmem:[#allocation5 + $0x58c] sm:$0xf]
    %v440 = vld [vmem:[#allocation5 + $0x590] sm:$0xf]
    %v441 = vld [vmem:[#allocation5 + $0x594] sm:$0xf]
    %v442 = vld [vmem:[#allocation5 + $0x598] sm:$0xf]
    %v443 = vld [vmem:[#allocation5 + $0x59c] sm:$0xf]
    %v444 = vld [vmem:[#allocation5 + $0x5a0] sm:$0xf]
    %v445 = vld [vmem:[#allocation5 + $0x5a4] sm:$0xf]
    %v446 = vld [vmem:[#allocation5 + $0x5a8] sm:$0xf]
    %v447 = vld [vmem:[#allocation5 + $0x5ac] sm:$0xf]
    %v448 = vld [vmem:[#allocation5 + $0x5b0] sm:$0xf]
    %v449 = vld [vmem:[#allocation5 + $0x5b4] sm:$0xf]
    %v450 = vld [vmem:[#allocation5 + $0x5b8] sm:$0xf]
    %v451 = vld [vmem:[#allocation5 + $0x5bc] sm:$0xf]
    %v452 = vld [vmem:[#allocation5 + $0x5c0] sm:$0xf]
    %v453 = vld [vmem:[#allocation5 + $0x5c4] sm:$0xf]
    %v454 = vld [vmem:[#allocation5 + $0x5c8] sm:$0xf]
    %v455 = vld [vmem:[#allocation5 + $0x5cc] sm:$0xf]
    %v456 = vld [vmem:[#allocation5 + $0x5d0] sm:$0xf]
    %v457 = vld [vmem:[#allocation5 + $0x5d4] sm:$0xf]
    %v458 = vld [vmem:[#allocation5 + $0x5d8] sm:$0xf]
    %v459 = vld [vmem:[#allocation5 + $0x5dc] sm:$0xf]
    %v460 = vld [vmem:[#allocation5 + $0x5e0] sm:$0xf]
    %v461 = vld [vmem:[#allocation5 + $0x5e4] sm:$0xf]
    %v462 = vld [vmem:[#allocation5 + $0x5e8] sm:$0xf]
    %v463 = vld [vmem:[#allocation5 + $0x5ec] sm:$0xf]
    %v464 = vld [vmem:[#allocation5 + $0x5f0] sm:$0xf]
    %v465 = vld [vmem:[#allocation5 + $0x5f4] sm:$0xf]
    %v466 = vld [vmem:[#allocation5 + $0x5f8] sm:$0xf]
    %v467 = vld [vmem:[#allocation5 + $0x5fc] sm:$0xf]
    %v468 = vld [vmem:[%s2] sm:$0x1]
    %v470 = vlaneseq
    %v471 = vshrl.u32 %v470, 7
    %v472 = vsub.s32 0, %v471
    %v473 = vrot.slane %v468, %v472
    %v499 = vunpack.c.l.b16 %v60
    %v500 = vunpack.c.h.b16 %v60
    %v501 = vunpack.c.l.b16 %v61
    %v502 = vunpack.c.h.b16 %v61
    %v503 = vunpack.c.l.b16 %v62
    %v504 = vunpack.c.h.b16 %v62
    %v505 = vunpack.c.l.b16 %v63
    %v506 = vunpack.c.h.b16 %v63
    %v507 = vunpack.c.l.b16 %v64
    %v508 = vunpack.c.h.b16 %v64
    %v509 = vunpack.c.l.b16 %v65
    %v510 = vunpack.c.h.b16 %v65
    %v511 = vunpack.c.l.b16 %v66
    %v512 = vunpack.c.h.b16 %v66
    %v513 = vunpack.c.l.b16 %v67
    %v514 = vunpack.c.h.b16 %v67
    %v515 = vunpack.c.l.b16 %v68
    %v516 = vunpack.c.h.b16 %v68
    %v517 = vunpack.c.l.b16 %v69
    %v518 = vunpack.c.h.b16 %v69
    %v519 = vunpack.c.l.b16 %v70
    %v520 = vunpack.c.h.b16 %v70
    %v521 = vunpack.c.l.b16 %v71
    %v522 = vunpack.c.h.b16 %v71
    %v523 = vunpack.c.l.b16 %v72
    %v524 = vunpack.c.h.b16 %v72
    %v525 = vunpack.c.l.b16 %v73
    %v526 = vunpack.c.h.b16 %v73
    %v527 = vunpack.c.l.b16 %v74
    %v528 = vunpack.c.h.b16 %v74
    %v529 = vunpack.c.l.b16 %v75
    %v530 = vunpack.c.h.b16 %v75
    %v531 = vunpack.c.l.b16 %v76
    %v532 = vunpack.c.h.b16 %v76
    %v533 = vunpack.c.l.b16 %v77
    %v534 = vunpack.c.h.b16 %v77
    %v535 = vunpack.c.l.b16 %v78
    %v536 = vunpack.c.h.b16 %v78
    %v537 = vunpack.c.l.b16 %v79
    %v538 = vunpack.c.h.b16 %v79
    %v539 = vunpack.c.l.b16 %v80
    %v540 = vunpack.c.h.b16 %v80
    %v541 = vunpack.c.l.b16 %v81
    %v542 = vunpack.c.h.b16 %v81
    %v543 = vunpack.c.l.b16 %v82
    %v544 = vunpack.c.h.b16 %v82
    %v545 = vunpack.c.l.b16 %v83
    %v546 = vunpack.c.h.b16 %v83
    %v547 = vpack.c.b16 %v523, %v499
    %v548 = vpack.c.b16 %v524, %v500
    %v549 = vpack.c.b16 %v525, %v501
    %v550 = vpack.c.b16 %v526, %v502
    %v551 = vpack.c.b16 %v527, %v503
    %v552 = vpack.c.b16 %v528, %v504
    %v553 = vpack.c.b16 %v529, %v505
    %v554 = vpack.c.b16 %v530, %v506
    %v555 = vpack.c.b16 %v531, %v507
    %v556 = vpack.c.b16 %v532, %v508
    %v557 = vpack.c.b16 %v533, %v509
    %v558 = vpack.c.b16 %v534, %v510
    %v559 = vpack.c.b16 %v535, %v511
    %v560 = vpack.c.b16 %v536, %v512
    %v561 = vpack.c.b16 %v537, %v513
    %v562 = vpack.c.b16 %v538, %v514
    %v563 = vpack.c.b16 %v539, %v515
    %v564 = vpack.c.b16 %v540, %v516
    %v565 = vpack.c.b16 %v541, %v517
    %v566 = vpack.c.b16 %v542, %v518
    %v567 = vpack.c.b16 %v543, %v519
    %v568 = vpack.c.b16 %v544, %v520
    %v569 = vpack.c.b16 %v545, %v521
    %v570 = vpack.c.b16 %v546, %v522
    %v979 = vunpack.c.l.b16 %v84
    %v980 = vunpack.c.l.b16 %v85
    %v981 = vunpack.c.l.b16 %v86
    %v982 = vunpack.c.l.b16 %v87
    %v983 = vunpack.c.l.b16 %v88
    %v984 = vunpack.c.l.b16 %v89
    %v985 = vunpack.c.l.b16 %v90
    %v986 = vunpack.c.l.b16 %v91
    %v987 = vunpack.c.l.b16 %v92
    %v988 = vunpack.c.l.b16 %v93
    %v989 = vunpack.c.l.b16 %v94
    %v990 = vunpack.c.l.b16 %v95
    %v991 = vunpack.c.l.b16 %v96
    %v992 = vunpack.c.l.b16 %v97
    %v993 = vunpack.c.l.b16 %v98
    %v994 = vunpack.c.l.b16 %v99
    %v995 = vunpack.c.l.b16 %v100
    %v996 = vunpack.c.l.b16 %v101
    %v997 = vunpack.c.l.b16 %v102
    %v998 = vunpack.c.l.b16 %v103
    %v999 = vunpack.c.l.b16 %v104
    %v1000 = vunpack.c.l.b16 %v105
    %v1001 = vunpack.c.l.b16 %v106
    %v1002 = vunpack.c.l.b16 %v107
    %v1003 = vunpack.c.l.b16 %v108
    %v1004 = vunpack.c.l.b16 %v109
    %v1005 = vunpack.c.l.b16 %v110
    %v1006 = vunpack.c.l.b16 %v111
    %v1007 = vunpack.c.l.b16 %v112
    %v1008 = vunpack.c.l.b16 %v113
    %v1009 = vunpack.c.l.b16 %v114
    %v1010 = vunpack.c.l.b16 %v115
    %v1011 = vunpack.c.l.b16 %v116
    %v1012 = vunpack.c.l.b16 %v117
    %v1013 = vunpack.c.l.b16 %v118
    %v1014 = vunpack.c.l.b16 %v119
    %v1015 = vunpack.c.l.b16 %v120
    %v1016 = vunpack.c.l.b16 %v121
    %v1017 = vunpack.c.l.b16 %v122
    %v1018 = vunpack.c.l.b16 %v123
    %v1019 = vunpack.c.l.b16 %v124
    %v1020 = vunpack.c.l.b16 %v125
    %v1021 = vunpack.c.l.b16 %v126
    %v1022 = vunpack.c.l.b16 %v127
    %v1023 = vunpack.c.l.b16 %v128
    %v1024 = vunpack.c.l.b16 %v129
    %v1025 = vunpack.c.l.b16 %v130
    %v1026 = vunpack.c.l.b16 %v131
    %v1027 = vunpack.c.l.b16 %v132
    %v1028 = vunpack.c.l.b16 %v133
    %v1029 = vunpack.c.l.b16 %v134
    %v1030 = vunpack.c.l.b16 %v135
    %v1031 = vunpack.c.l.b16 %v136
    %v1032 = vunpack.c.l.b16 %v137
    %v1033 = vunpack.c.l.b16 %v138
    %v1034 = vunpack.c.l.b16 %v139
    %v1035 = vunpack.c.l.b16 %v140
    %v1036 = vunpack.c.l.b16 %v141
    %v1037 = vunpack.c.l.b16 %v142
    %v1038 = vunpack.c.l.b16 %v143
    %v1039 = vunpack.c.l.b16 %v144
    %v1040 = vunpack.c.l.b16 %v145
    %v1041 = vunpack.c.l.b16 %v146
    %v1042 = vunpack.c.l.b16 %v147
    %v1043 = vunpack.c.l.b16 %v148
    %v1044 = vunpack.c.l.b16 %v149
    %v1045 = vunpack.c.l.b16 %v150
    %v1046 = vunpack.c.l.b16 %v151
    %v1047 = vunpack.c.l.b16 %v152
    %v1048 = vunpack.c.l.b16 %v153
    %v1049 = vunpack.c.l.b16 %v154
    %v1050 = vunpack.c.l.b16 %v155
    %v1051 = vunpack.c.l.b16 %v156
    %v1052 = vunpack.c.l.b16 %v157
    %v1053 = vunpack.c.l.b16 %v158
    %v1054 = vunpack.c.l.b16 %v159
    %v1055 = vunpack.c.l.b16 %v160
    %v1056 = vunpack.c.l.b16 %v161
    %v1057 = vunpack.c.l.b16 %v162
    %v1058 = vunpack.c.l.b16 %v163
    %v1059 = vunpack.c.l.b16 %v164
    %v1060 = vunpack.c.l.b16 %v165
    %v1061 = vunpack.c.l.b16 %v166
    %v1062 = vunpack.c.l.b16 %v167
    %v1063 = vunpack.c.l.b16 %v168
    %v1064 = vunpack.c.l.b16 %v169
    %v1065 = vunpack.c.l.b16 %v170
    %v1066 = vunpack.c.l.b16 %v171
    %v1067 = vunpack.c.l.b16 %v172
    %v1068 = vunpack.c.l.b16 %v173
    %v1069 = vunpack.c.l.b16 %v174
    %v1070 = vunpack.c.l.b16 %v175
    %v1071 = vunpack.c.l.b16 %v176
    %v1072 = vunpack.c.l.b16 %v177
    %v1073 = vunpack.c.l.b16 %v178
    %v1074 = vunpack.c.l.b16 %v179
    %v1075 = vunpack.c.l.b16 %v180
    %v1076 = vunpack.c.l.b16 %v181
    %v1077 = vunpack.c.l.b16 %v182
    %v1078 = vunpack.c.l.b16 %v183
    %v1079 = vunpack.c.l.b16 %v184
    %v1080 = vunpack.c.l.b16 %v185
    %v1081 = vunpack.c.l.b16 %v186
    %v1082 = vunpack.c.l.b16 %v187
    %v1083 = vunpack.c.l.b16 %v188
    %v1084 = vunpack.c.l.b16 %v189
    %v1085 = vunpack.c.l.b16 %v190
    %v1086 = vunpack.c.l.b16 %v191
    %v1087 = vunpack.c.l.b16 %v192
    %v1088 = vunpack.c.l.b16 %v193
    %v1089 = vunpack.c.l.b16 %v194
    %v1090 = vunpack.c.l.b16 %v195
    %v1091 = vunpack.c.l.b16 %v196
    %v1092 = vunpack.c.l.b16 %v197
    %v1093 = vunpack.c.l.b16 %v198
    %v1094 = vunpack.c.l.b16 %v199
    %v1095 = vunpack.c.l.b16 %v200
    %v1096 = vunpack.c.l.b16 %v201
    %v1097 = vunpack.c.l.b16 %v202
    %v1098 = vunpack.c.l.b16 %v203
    %v1099 = vunpack.c.l.b16 %v204
    %v1100 = vunpack.c.l.b16 %v205
    %v1101 = vunpack.c.l.b16 %v206
    %v1102 = vunpack.c.l.b16 %v207
    %v1103 = vunpack.c.l.b16 %v208
    %v1104 = vunpack.c.l.b16 %v209
    %v1105 = vunpack.c.l.b16 %v210
    %v1106 = vunpack.c.l.b16 %v211
    %v1107 = vunpack.c.l.b16 %v212
    %v1108 = vunpack.c.l.b16 %v213
    %v1109 = vunpack.c.l.b16 %v214
    %v1110 = vunpack.c.l.b16 %v215
    %v1111 = vunpack.c.l.b16 %v216
    %v1112 = vunpack.c.l.b16 %v217
    %v1113 = vunpack.c.l.b16 %v218
    %v1114 = vunpack.c.l.b16 %v219
    %v1115 = vunpack.c.l.b16 %v220
    %v1116 = vunpack.c.l.b16 %v221
    %v1117 = vunpack.c.l.b16 %v222
    %v1118 = vunpack.c.l.b16 %v223
    %v1119 = vunpack.c.l.b16 %v224
    %v1120 = vunpack.c.l.b16 %v225
    %v1121 = vunpack.c.l.b16 %v226
    %v1122 = vunpack.c.l.b16 %v227
    %v1123 = vunpack.c.l.b16 %v228
    %v1124 = vunpack.c.l.b16 %v229
    %v1125 = vunpack.c.l.b16 %v230
    %v1126 = vunpack.c.l.b16 %v231
    %v1127 = vunpack.c.l.b16 %v232
    %v1128 = vunpack.c.l.b16 %v233
    %v1129 = vunpack.c.l.b16 %v234
    %v1130 = vunpack.c.l.b16 %v235
    %v1131 = vunpack.c.l.b16 %v236
    %v1132 = vunpack.c.l.b16 %v237
    %v1133 = vunpack.c.l.b16 %v238
    %v1134 = vunpack.c.l.b16 %v239
    %v1135 = vunpack.c.l.b16 %v240
    %v1136 = vunpack.c.l.b16 %v241
    %v1137 = vunpack.c.l.b16 %v242
    %v1138 = vunpack.c.l.b16 %v243
    %v1139 = vunpack.c.l.b16 %v244
    %v1140 = vunpack.c.l.b16 %v245
    %v1141 = vunpack.c.l.b16 %v246
    %v1142 = vunpack.c.l.b16 %v247
    %v1143 = vunpack.c.l.b16 %v248
    %v1144 = vunpack.c.l.b16 %v249
    %v1145 = vunpack.c.l.b16 %v250
    %v1146 = vunpack.c.l.b16 %v251
    %v1147 = vunpack.c.l.b16 %v252
    %v1148 = vunpack.c.l.b16 %v253
    %v1149 = vunpack.c.l.b16 %v254
    %v1150 = vunpack.c.l.b16 %v255
    %v1151 = vunpack.c.l.b16 %v256
    %v1152 = vunpack.c.l.b16 %v257
    %v1153 = vunpack.c.l.b16 %v258
    %v1154 = vunpack.c.l.b16 %v259
    %v1155 = vunpack.c.l.b16 %v260
    %v1156 = vunpack.c.l.b16 %v261
    %v1157 = vunpack.c.l.b16 %v262
    %v1158 = vunpack.c.l.b16 %v263
    %v1159 = vunpack.c.l.b16 %v264
    %v1160 = vunpack.c.l.b16 %v265
    %v1161 = vunpack.c.l.b16 %v266
    %v1162 = vunpack.c.l.b16 %v267
    %v1163 = vunpack.c.l.b16 %v268
    %v1164 = vunpack.c.l.b16 %v269
    %v1165 = vunpack.c.l.b16 %v270
    %v1166 = vunpack.c.l.b16 %v271
    %v1167 = vunpack.c.l.b16 %v272
    %v1168 = vunpack.c.l.b16 %v273
    %v1169 = vunpack.c.l.b16 %v274
    %v1170 = vunpack.c.l.b16 %v275
    %v1171 = vunpack.c.l.b16 %v276
    %v1172 = vunpack.c.l.b16 %v277
    %v1173 = vunpack.c.l.b16 %v278
    %v1174 = vunpack.c.l.b16 %v279
    %v1175 = vunpack.c.l.b16 %v280
    %v1176 = vunpack.c.l.b16 %v281
    %v1177 = vunpack.c.l.b16 %v282
    %v1178 = vunpack.c.l.b16 %v283
    %v1179 = vunpack.c.l.b16 %v284
    %v1180 = vunpack.c.l.b16 %v285
    %v1181 = vunpack.c.l.b16 %v286
    %v1182 = vunpack.c.l.b16 %v287
    %v1183 = vunpack.c.l.b16 %v288
    %v1184 = vunpack.c.l.b16 %v289
    %v1185 = vunpack.c.l.b16 %v290
    %v1186 = vunpack.c.l.b16 %v291
    %v1187 = vunpack.c.l.b16 %v292
    %v1188 = vunpack.c.l.b16 %v293
    %v1189 = vunpack.c.l.b16 %v294
    %v1190 = vunpack.c.l.b16 %v295
    %v1191 = vunpack.c.l.b16 %v296
    %v1192 = vunpack.c.l.b16 %v297
    %v1193 = vunpack.c.l.b16 %v298
    %v1194 = vunpack.c.l.b16 %v299
    %v1195 = vunpack.c.l.b16 %v300
    %v1196 = vunpack.c.l.b16 %v301
    %v1197 = vunpack.c.l.b16 %v302
    %v1198 = vunpack.c.l.b16 %v303
    %v1199 = vunpack.c.l.b16 %v304
    %v1200 = vunpack.c.l.b16 %v305
    %v1201 = vunpack.c.l.b16 %v306
    %v1202 = vunpack.c.l.b16 %v307
    %v1203 = vunpack.c.l.b16 %v308
    %v1204 = vunpack.c.l.b16 %v309
    %v1205 = vunpack.c.l.b16 %v310
    %v1206 = vunpack.c.l.b16 %v311
    %v1207 = vunpack.c.l.b16 %v312
    %v1208 = vunpack.c.l.b16 %v313
    %v1209 = vunpack.c.l.b16 %v314
    %v1210 = vunpack.c.l.b16 %v315
    %v1211 = vunpack.c.l.b16 %v316
    %v1212 = vunpack.c.l.b16 %v317
    %v1213 = vunpack.c.l.b16 %v318
    %v1214 = vunpack.c.l.b16 %v319
    %v1215 = vunpack.c.l.b16 %v320
    %v1216 = vunpack.c.l.b16 %v321
    %v1217 = vunpack.c.l.b16 %v322
    %v1218 = vunpack.c.l.b16 %v323
    %v1219 = vunpack.c.l.b16 %v324
    %v1220 = vunpack.c.l.b16 %v325
    %v1221 = vunpack.c.l.b16 %v326
    %v1222 = vunpack.c.l.b16 %v327
    %v1223 = vunpack.c.l.b16 %v328
    %v1224 = vunpack.c.l.b16 %v329
    %v1225 = vunpack.c.l.b16 %v330
    %v1226 = vunpack.c.l.b16 %v331
    %v1227 = vunpack.c.l.b16 %v332
    %v1228 = vunpack.c.l.b16 %v333
    %v1229 = vunpack.c.l.b16 %v334
    %v1230 = vunpack.c.l.b16 %v335
    %v1231 = vunpack.c.l.b16 %v336
    %v1232 = vunpack.c.l.b16 %v337
    %v1233 = vunpack.c.l.b16 %v338
    %v1234 = vunpack.c.l.b16 %v339
    %v1235 = vunpack.c.l.b16 %v340
    %v1236 = vunpack.c.l.b16 %v341
    %v1237 = vunpack.c.l.b16 %v342
    %v1238 = vunpack.c.l.b16 %v343
    %v1239 = vunpack.c.l.b16 %v344
    %v1240 = vunpack.c.l.b16 %v345
    %v1241 = vunpack.c.l.b16 %v346
    %v1242 = vunpack.c.l.b16 %v347
    %v1243 = vunpack.c.l.b16 %v348
    %v1244 = vunpack.c.l.b16 %v349
    %v1245 = vunpack.c.l.b16 %v350
    %v1246 = vunpack.c.l.b16 %v351
    %v1247 = vunpack.c.l.b16 %v352
    %v1248 = vunpack.c.l.b16 %v353
    %v1249 = vunpack.c.l.b16 %v354
    %v1250 = vunpack.c.l.b16 %v355
    %v1251 = vunpack.c.l.b16 %v356
    %v1252 = vunpack.c.l.b16 %v357
    %v1253 = vunpack.c.l.b16 %v358
    %v1254 = vunpack.c.l.b16 %v359
    %v1255 = vunpack.c.l.b16 %v360
    %v1256 = vunpack.c.l.b16 %v361
    %v1257 = vunpack.c.l.b16 %v362
    %v1258 = vunpack.c.l.b16 %v363
    %v1259 = vunpack.c.l.b16 %v364
    %v1260 = vunpack.c.l.b16 %v365
    %v1261 = vunpack.c.l.b16 %v366
    %v1262 = vunpack.c.l.b16 %v367
    %v1263 = vunpack.c.l.b16 %v368
    %v1264 = vunpack.c.l.b16 %v369
    %v1265 = vunpack.c.l.b16 %v370
    %v1266 = vunpack.c.l.b16 %v371
    %v1267 = vunpack.c.l.b16 %v372
    %v1268 = vunpack.c.l.b16 %v373
    %v1269 = vunpack.c.l.b16 %v374
    %v1270 = vunpack.c.l.b16 %v375
    %v1271 = vunpack.c.l.b16 %v376
    %v1272 = vunpack.c.l.b16 %v377
    %v1273 = vunpack.c.l.b16 %v378
    %v1274 = vunpack.c.l.b16 %v379
    %v1275 = vunpack.c.l.b16 %v380
    %v1276 = vunpack.c.l.b16 %v381
    %v1277 = vunpack.c.l.b16 %v382
    %v1278 = vunpack.c.l.b16 %v383
    %v1279 = vunpack.c.l.b16 %v384
    %v1280 = vunpack.c.l.b16 %v385
    %v1281 = vunpack.c.l.b16 %v386
    %v1282 = vunpack.c.l.b16 %v387
    %v1283 = vunpack.c.l.b16 %v388
    %v1284 = vunpack.c.l.b16 %v389
    %v1285 = vunpack.c.l.b16 %v390
    %v1286 = vunpack.c.l.b16 %v391
    %v1287 = vunpack.c.l.b16 %v392
    %v1288 = vunpack.c.l.b16 %v393
    %v1289 = vunpack.c.l.b16 %v394
    %v1290 = vunpack.c.l.b16 %v395
    %v1291 = vunpack.c.l.b16 %v396
    %v1292 = vunpack.c.l.b16 %v397
    %v1293 = vunpack.c.l.b16 %v398
    %v1294 = vunpack.c.l.b16 %v399
    %v1295 = vunpack.c.l.b16 %v400
    %v1296 = vunpack.c.l.b16 %v401
    %v1297 = vunpack.c.l.b16 %v402
    %v1298 = vunpack.c.l.b16 %v403
    %v1299 = vunpack.c.l.b16 %v404
    %v1300 = vunpack.c.l.b16 %v405
    %v1301 = vunpack.c.l.b16 %v406
    %v1302 = vunpack.c.l.b16 %v407
    %v1303 = vunpack.c.l.b16 %v408
    %v1304 = vunpack.c.l.b16 %v409
    %v1305 = vunpack.c.l.b16 %v410
    %v1306 = vunpack.c.l.b16 %v411
    %v1307 = vunpack.c.l.b16 %v412
    %v1308 = vunpack.c.l.b16 %v413
    %v1309 = vunpack.c.l.b16 %v414
    %v1310 = vunpack.c.l.b16 %v415
    %v1311 = vunpack.c.l.b16 %v416
    %v1312 = vunpack.c.l.b16 %v417
    %v1313 = vunpack.c.l.b16 %v418
    %v1314 = vunpack.c.l.b16 %v419
    %v1315 = vunpack.c.l.b16 %v420
    %v1316 = vunpack.c.l.b16 %v421
    %v1317 = vunpack.c.l.b16 %v422
    %v1318 = vunpack.c.l.b16 %v423
    %v1319 = vunpack.c.l.b16 %v424
    %v1320 = vunpack.c.l.b16 %v425
    %v1321 = vunpack.c.l.b16 %v426
    %v1322 = vunpack.c.l.b16 %v427
    %v1323 = vunpack.c.l.b16 %v428
    %v1324 = vunpack.c.l.b16 %v429
    %v1325 = vunpack.c.l.b16 %v430
    %v1326 = vunpack.c.l.b16 %v431
    %v1327 = vunpack.c.l.b16 %v432
    %v1328 = vunpack.c.l.b16 %v433
    %v1329 = vunpack.c.l.b16 %v434
    %v1330 = vunpack.c.l.b16 %v435
    %v1331 = vunpack.c.l.b16 %v436
    %v1332 = vunpack.c.l.b16 %v437
    %v1333 = vunpack.c.l.b16 %v438
    %v1334 = vunpack.c.l.b16 %v439
    %v1335 = vunpack.c.l.b16 %v440
    %v1336 = vunpack.c.l.b16 %v441
    %v1337 = vunpack.c.l.b16 %v442
    %v1338 = vunpack.c.l.b16 %v443
    %v1339 = vunpack.c.l.b16 %v444
    %v1340 = vunpack.c.l.b16 %v445
    %v1341 = vunpack.c.l.b16 %v446
    %v1342 = vunpack.c.l.b16 %v447
    %v1343 = vunpack.c.l.b16 %v448
    %v1344 = vunpack.c.l.b16 %v449
    %v1345 = vunpack.c.l.b16 %v450
    %v1346 = vunpack.c.l.b16 %v451
    %v1347 = vunpack.c.l.b16 %v452
    %v1348 = vunpack.c.l.b16 %v453
    %v1349 = vunpack.c.l.b16 %v454
    %v1350 = vunpack.c.l.b16 %v455
    %v1351 = vunpack.c.l.b16 %v456
    %v1352 = vunpack.c.l.b16 %v457
    %v1353 = vunpack.c.l.b16 %v458
    %v1354 = vunpack.c.l.b16 %v459
    %v1355 = vunpack.c.l.b16 %v460
    %v1356 = vunpack.c.l.b16 %v461
    %v1357 = vunpack.c.l.b16 %v462
    %v1358 = vunpack.c.l.b16 %v463
    %v1359 = vunpack.c.l.b16 %v464
    %v1360 = vunpack.c.l.b16 %v465
    %v1361 = vunpack.c.l.b16 %v466
    %v1362 = vunpack.c.l.b16 %v467
    %v1363 = vpack.c.b16 %v980, %v979
    %v1364 = vpack.c.b16 %v982, %v981
    %v1365 = vpack.c.b16 %v984, %v983
    %v1366 = vpack.c.b16 %v986, %v985
    %v1367 = vpack.c.b16 %v988, %v987
    %v1368 = vpack.c.b16 %v990, %v989
    %v1369 = vpack.c.b16 %v992, %v991
    %v1370 = vpack.c.b16 %v994, %v993
    %v1371 = vpack.c.b16 %v996, %v995
    %v1372 = vpack.c.b16 %v998, %v997
    %v1373 = vpack.c.b16 %v1000, %v999
    %v1374 = vpack.c.b16 %v1002, %v1001
    %v1375 = vpack.c.b16 %v1004, %v1003
    %v1376 = vpack.c.b16 %v1006, %v1005
    %v1377 = vpack.c.b16 %v1008, %v1007
    %v1378 = vpack.c.b16 %v1010, %v1009
    %v1379 = vpack.c.b16 %v1012, %v1011
    %v1380 = vpack.c.b16 %v1014, %v1013
    %v1381 = vpack.c.b16 %v1016, %v1015
    %v1382 = vpack.c.b16 %v1018, %v1017
    %v1383 = vpack.c.b16 %v1020, %v1019
    %v1384 = vpack.c.b16 %v1022, %v1021
    %v1385 = vpack.c.b16 %v1024, %v1023
    %v1386 = vpack.c.b16 %v1026, %v1025
    %v1387 = vpack.c.b16 %v1028, %v1027
    %v1388 = vpack.c.b16 %v1030, %v1029
    %v1389 = vpack.c.b16 %v1032, %v1031
    %v1390 = vpack.c.b16 %v1034, %v1033
    %v1391 = vpack.c.b16 %v1036, %v1035
    %v1392 = vpack.c.b16 %v1038, %v1037
    %v1393 = vpack.c.b16 %v1040, %v1039
    %v1394 = vpack.c.b16 %v1042, %v1041
    %v1395 = vpack.c.b16 %v1044, %v1043
    %v1396 = vpack.c.b16 %v1046, %v1045
    %v1397 = vpack.c.b16 %v1048, %v1047
    %v1398 = vpack.c.b16 %v1050, %v1049
    %v1399 = vpack.c.b16 %v1052, %v1051
    %v1400 = vpack.c.b16 %v1054, %v1053
    %v1401 = vpack.c.b16 %v1056, %v1055
    %v1402 = vpack.c.b16 %v1058, %v1057
    %v1403 = vpack.c.b16 %v1060, %v1059
    %v1404 = vpack.c.b16 %v1062, %v1061
    %v1405 = vpack.c.b16 %v1064, %v1063
    %v1406 = vpack.c.b16 %v1066, %v1065
    %v1407 = vpack.c.b16 %v1068, %v1067
    %v1408 = vpack.c.b16 %v1070, %v1069
    %v1409 = vpack.c.b16 %v1072, %v1071
    %v1410 = vpack.c.b16 %v1074, %v1073
    %v1411 = vpack.c.b16 %v1076, %v1075
    %v1412 = vpack.c.b16 %v1078, %v1077
    %v1413 = vpack.c.b16 %v1080, %v1079
    %v1414 = vpack.c.b16 %v1082, %v1081
    %v1415 = vpack.c.b16 %v1084, %v1083
    %v1416 = vpack.c.b16 %v1086, %v1085
    %v1417 = vpack.c.b16 %v1088, %v1087
    %v1418 = vpack.c.b16 %v1090, %v1089
    %v1419 = vpack.c.b16 %v1092, %v1091
    %v1420 = vpack.c.b16 %v1094, %v1093
    %v1421 = vpack.c.b16 %v1096, %v1095
    %v1422 = vpack.c.b16 %v1098, %v1097
    %v1423 = vpack.c.b16 %v1100, %v1099
    %v1424 = vpack.c.b16 %v1102, %v1101
    %v1425 = vpack.c.b16 %v1104, %v1103
    %v1426 = vpack.c.b16 %v1106, %v1105
    %v1427 = vpack.c.b16 %v1108, %v1107
    %v1428 = vpack.c.b16 %v1110, %v1109
    %v1429 = vpack.c.b16 %v1112, %v1111
    %v1430 = vpack.c.b16 %v1114, %v1113
    %v1431 = vpack.c.b16 %v1116, %v1115
    %v1432 = vpack.c.b16 %v1118, %v1117
    %v1433 = vpack.c.b16 %v1120, %v1119
    %v1434 = vpack.c.b16 %v1122, %v1121
    %v1435 = vpack.c.b16 %v1124, %v1123
    %v1436 = vpack.c.b16 %v1126, %v1125
    %v1437 = vpack.c.b16 %v1128, %v1127
    %v1438 = vpack.c.b16 %v1130, %v1129
    %v1439 = vpack.c.b16 %v1132, %v1131
    %v1440 = vpack.c.b16 %v1134, %v1133
    %v1441 = vpack.c.b16 %v1136, %v1135
    %v1442 = vpack.c.b16 %v1138, %v1137
    %v1443 = vpack.c.b16 %v1140, %v1139
    %v1444 = vpack.c.b16 %v1142, %v1141
    %v1445 = vpack.c.b16 %v1144, %v1143
    %v1446 = vpack.c.b16 %v1146, %v1145
    %v1447 = vpack.c.b16 %v1148, %v1147
    %v1448 = vpack.c.b16 %v1150, %v1149
    %v1449 = vpack.c.b16 %v1152, %v1151
    %v1450 = vpack.c.b16 %v1154, %v1153
    %v1451 = vpack.c.b16 %v1156, %v1155
    %v1452 = vpack.c.b16 %v1158, %v1157
    %v1453 = vpack.c.b16 %v1160, %v1159
    %v1454 = vpack.c.b16 %v1162, %v1161
    %v1455 = vpack.c.b16 %v1164, %v1163
    %v1456 = vpack.c.b16 %v1166, %v1165
    %v1457 = vpack.c.b16 %v1168, %v1167
    %v1458 = vpack.c.b16 %v1170, %v1169
    %v1459 = vpack.c.b16 %v1172, %v1171
    %v1460 = vpack.c.b16 %v1174, %v1173
    %v1461 = vpack.c.b16 %v1176, %v1175
    %v1462 = vpack.c.b16 %v1178, %v1177
    %v1463 = vpack.c.b16 %v1180, %v1179
    %v1464 = vpack.c.b16 %v1182, %v1181
    %v1465 = vpack.c.b16 %v1184, %v1183
    %v1466 = vpack.c.b16 %v1186, %v1185
    %v1467 = vpack.c.b16 %v1188, %v1187
    %v1468 = vpack.c.b16 %v1190, %v1189
    %v1469 = vpack.c.b16 %v1192, %v1191
    %v1470 = vpack.c.b16 %v1194, %v1193
    %v1471 = vpack.c.b16 %v1196, %v1195
    %v1472 = vpack.c.b16 %v1198, %v1197
    %v1473 = vpack.c.b16 %v1200, %v1199
    %v1474 = vpack.c.b16 %v1202, %v1201
    %v1475 = vpack.c.b16 %v1204, %v1203
    %v1476 = vpack.c.b16 %v1206, %v1205
    %v1477 = vpack.c.b16 %v1208, %v1207
    %v1478 = vpack.c.b16 %v1210, %v1209
    %v1479 = vpack.c.b16 %v1212, %v1211
    %v1480 = vpack.c.b16 %v1214, %v1213
    %v1481 = vpack.c.b16 %v1216, %v1215
    %v1482 = vpack.c.b16 %v1218, %v1217
    %v1483 = vpack.c.b16 %v1220, %v1219
    %v1484 = vpack.c.b16 %v1222, %v1221
    %v1485 = vpack.c.b16 %v1224, %v1223
    %v1486 = vpack.c.b16 %v1226, %v1225
    %v1487 = vpack.c.b16 %v1228, %v1227
    %v1488 = vpack.c.b16 %v1230, %v1229
    %v1489 = vpack.c.b16 %v1232, %v1231
    %v1490 = vpack.c.b16 %v1234, %v1233
    %v1491 = vpack.c.b16 %v1236, %v1235
    %v1492 = vpack.c.b16 %v1238, %v1237
    %v1493 = vpack.c.b16 %v1240, %v1239
    %v1494 = vpack.c.b16 %v1242, %v1241
    %v1495 = vpack.c.b16 %v1244, %v1243
    %v1496 = vpack.c.b16 %v1246, %v1245
    %v1497 = vpack.c.b16 %v1248, %v1247
    %v1498 = vpack.c.b16 %v1250, %v1249
    %v1499 = vpack.c.b16 %v1252, %v1251
    %v1500 = vpack.c.b16 %v1254, %v1253
    %v1501 = vpack.c.b16 %v1256, %v1255
    %v1502 = vpack.c.b16 %v1258, %v1257
    %v1503 = vpack.c.b16 %v1260, %v1259
    %v1504 = vpack.c.b16 %v1262, %v1261
    %v1505 = vpack.c.b16 %v1264, %v1263
    %v1506 = vpack.c.b16 %v1266, %v1265
    %v1507 = vpack.c.b16 %v1268, %v1267
    %v1508 = vpack.c.b16 %v1270, %v1269
    %v1509 = vpack.c.b16 %v1272, %v1271
    %v1510 = vpack.c.b16 %v1274, %v1273
    %v1511 = vpack.c.b16 %v1276, %v1275
    %v1512 = vpack.c.b16 %v1278, %v1277
    %v1513 = vpack.c.b16 %v1280, %v1279
    %v1514 = vpack.c.b16 %v1282, %v1281
    %v1515 = vpack.c.b16 %v1284, %v1283
    %v1516 = vpack.c.b16 %v1286, %v1285
    %v1517 = vpack.c.b16 %v1288, %v1287
    %v1518 = vpack.c.b16 %v1290, %v1289
    %v1519 = vpack.c.b16 %v1292, %v1291
    %v1520 = vpack.c.b16 %v1294, %v1293
    %v1521 = vpack.c.b16 %v1296, %v1295
    %v1522 = vpack.c.b16 %v1298, %v1297
    %v1523 = vpack.c.b16 %v1300, %v1299
    %v1524 = vpack.c.b16 %v1302, %v1301
    %v1525 = vpack.c.b16 %v1304, %v1303
    %v1526 = vpack.c.b16 %v1306, %v1305
    %v1527 = vpack.c.b16 %v1308, %v1307
    %v1528 = vpack.c.b16 %v1310, %v1309
    %v1529 = vpack.c.b16 %v1312, %v1311
    %v1530 = vpack.c.b16 %v1314, %v1313
    %v1531 = vpack.c.b16 %v1316, %v1315
    %v1532 = vpack.c.b16 %v1318, %v1317
    %v1533 = vpack.c.b16 %v1320, %v1319
    %v1534 = vpack.c.b16 %v1322, %v1321
    %v1535 = vpack.c.b16 %v1324, %v1323
    %v1536 = vpack.c.b16 %v1326, %v1325
    %v1537 = vpack.c.b16 %v1328, %v1327
    %v1538 = vpack.c.b16 %v1330, %v1329
    %v1539 = vpack.c.b16 %v1332, %v1331
    %v1540 = vpack.c.b16 %v1334, %v1333
    %v1541 = vpack.c.b16 %v1336, %v1335
    %v1542 = vpack.c.b16 %v1338, %v1337
    %v1543 = vpack.c.b16 %v1340, %v1339
    %v1544 = vpack.c.b16 %v1342, %v1341
    %v1545 = vpack.c.b16 %v1344, %v1343
    %v1546 = vpack.c.b16 %v1346, %v1345
    %v1547 = vpack.c.b16 %v1348, %v1347
    %v1548 = vpack.c.b16 %v1350, %v1349
    %v1549 = vpack.c.b16 %v1352, %v1351
    %v1550 = vpack.c.b16 %v1354, %v1353
    %v1551 = vpack.c.b16 %v1356, %v1355
    %v1552 = vpack.c.b16 %v1358, %v1357
    %v1553 = vpack.c.b16 %v1360, %v1359
    %v1554 = vpack.c.b16 %v1362, %v1361
    %1747 = vmatprep.subr.bf16.mxu0 0
    %1748 = vmatpush1.bf16.msra.mxu0 %v1370
    %1749 = vmatprep.subr.bf16.mxu0 0
    %1750 = vmatpush1.bf16.msra.mxu0 %v1369
    %1751 = vmatprep.subr.bf16.mxu0 0
    %1752 = vmatpush1.bf16.msra.mxu0 %v1368
    %1753 = vmatprep.subr.bf16.mxu0 0
    %1754 = vmatpush1.bf16.msra.mxu0 %v1367
    %1755 = vmatprep.subr.bf16.mxu0 0
    %1756 = vmatpush1.bf16.msra.mxu0 %v1366
    %1757 = vmatprep.subr.bf16.mxu0 0
    %1758 = vmatpush1.bf16.msra.mxu0 %v1365
    %1759 = vmatprep.subr.bf16.mxu0 0
    %1760 = vmatpush1.bf16.msra.mxu0 %v1364
    %1761 = vmatprep.subr.bf16.mxu0 0
    %1762 = vmatpush1.bf16.msra.mxu0 %v1363
    %1763 = vmatprep.subr.bf16.mxu0 0
    %1764 = vmatpush2.bf16.msra.mxu0 %v1378
    %1765 = vmatprep.subr.bf16.mxu0 0
    %1766 = vmatpush2.bf16.msra.mxu0 %v1377
    %1767 = vmatprep.subr.bf16.mxu0 0
    %1768 = vmatpush2.bf16.msra.mxu0 %v1376
    %1769 = vmatprep.subr.bf16.mxu0 0
    %1770 = vmatpush2.bf16.msra.mxu0 %v1375
    %1771 = vmatprep.subr.bf16.mxu0 0
    %1772 = vmatpush2.bf16.msra.mxu0 %v1374
    %1773 = vmatprep.subr.bf16.mxu0 0
    %1774 = vmatpush2.bf16.msra.mxu0 %v1373
    %1775 = vmatprep.subr.bf16.mxu0 0
    %1776 = vmatpush2.bf16.msra.mxu0 %v1372
    %1777 = vmatprep.subr.bf16.mxu0 0
    %1778 = vmatpush2.bf16.msra.mxu0 %v1371
    %1779 = vmatprep.mubr.bf16.mxu0 %v548
    %1780 = vmatmul.mubr.bf16.gmra.mxu0 %v547
    %v1781 = vpop.f32.mrf.mxu0
    %v1782 = vadd.f32 %v473, %v1781
    %v1783 = vpop.f32.mrf.mxu0
    %v1784 = vpop.f32.mrf.mxu0
    %v1785 = vadd.f32 %v473, %v1784
    %v1786 = vpop.f32.mrf.mxu0
    %1787 = vdwg.mxu0
    %1788 = vmatprep.subr.bf16.mxu0 0
    %1789 = vmatpush1.bf16.msra.mxu0 %v1386
    %1790 = vmatprep.subr.bf16.mxu0 0
    %1791 = vmatpush1.bf16.msra.mxu0 %v1385
    %1792 = vmatprep.subr.bf16.mxu0 0
    %1793 = vmatpush1.bf16.msra.mxu0 %v1384
    %1794 = vmatprep.subr.bf16.mxu0 0
    %1795 = vmatpush1.bf16.msra.mxu0 %v1383
    %1796 = vmatprep.subr.bf16.mxu0 0
    %1797 = vmatpush1.bf16.msra.mxu0 %v1382
    %1798 = vmatprep.subr.bf16.mxu0 0
    %1799 = vmatpush1.bf16.msra.mxu0 %v1381
    %1800 = vmatprep.subr.bf16.mxu0 0
    %1801 = vmatpush1.bf16.msra.mxu0 %v1380
    %1802 = vmatprep.subr.bf16.mxu0 0
    %1803 = vmatpush1.bf16.msra.mxu0 %v1379
    %1804 = vmatprep.subr.bf16.mxu0 0
    %1805 = vmatpush2.bf16.msra.mxu0 %v1394
    %1806 = vmatprep.subr.bf16.mxu0 0
    %1807 = vmatpush2.bf16.msra.mxu0 %v1393
    %1808 = vmatprep.subr.bf16.mxu0 0
    %1809 = vmatpush2.bf16.msra.mxu0 %v1392
    %1810 = vmatprep.subr.bf16.mxu0 0
    %1811 = vmatpush2.bf16.msra.mxu0 %v1391
    %1812 = vmatprep.subr.bf16.mxu0 0
    %1813 = vmatpush2.bf16.msra.mxu0 %v1390
    %1814 = vmatprep.subr.bf16.mxu0 0
    %1815 = vmatpush2.bf16.msra.mxu0 %v1389
    %1816 = vmatprep.subr.bf16.mxu0 0
    %1817 = vmatpush2.bf16.msra.mxu0 %v1388
    %1818 = vmatprep.subr.bf16.mxu0 0
    %1819 = vmatpush2.bf16.msra.mxu0 %v1387
    %1820 = vmatprep.mubr.bf16.mxu0 %v550
    %1821 = vmatmul.mubr.bf16.gmra.mxu0 %v549
    %v1822 = vpop.f32.mrf.mxu0
    %v1823 = vadd.f32 %v1782, %v1822
    %v1824 = vpop.f32.mrf.mxu0
    %v1825 = vpop.f32.mrf.mxu0
    %v1826 = vadd.f32 %v1785, %v1825
    %v1827 = vpop.f32.mrf.mxu0
    %1828 = vdwg.mxu0
    %1829 = vmatprep.subr.bf16.mxu0 0
    %1830 = vmatpush1.bf16.msra.mxu0 %v1402
    %1831 = vmatprep.subr.bf16.mxu0 0
    %1832 = vmatpush1.bf16.msra.mxu0 %v1401
    %1833 = vmatprep.subr.bf16.mxu0 0
    %1834 = vmatpush1.bf16.msra.mxu0 %v1400
    %1835 = vmatprep.subr.bf16.mxu0 0
    %1836 = vmatpush1.bf16.msra.mxu0 %v1399
    %1837 = vmatprep.subr.bf16.mxu0 0
    %1838 = vmatpush1.bf16.msra.mxu0 %v1398
    %1839 = vmatprep.subr.bf16.mxu0 0
    %1840 = vmatpush1.bf16.msra.mxu0 %v1397
    %1841 = vmatprep.subr.bf16.mxu0 0
    %1842 = vmatpush1.bf16.msra.mxu0 %v1396
    %1843 = vmatprep.subr.bf16.mxu0 0
    %1844 = vmatpush1.bf16.msra.mxu0 %v1395
    %1845 = vmatprep.subr.bf16.mxu0 0
    %1846 = vmatpush2.bf16.msra.mxu0 %v1410
    %1847 = vmatprep.subr.bf16.mxu0 0
    %1848 = vmatpush2.bf16.msra.mxu0 %v1409
    %1849 = vmatprep.subr.bf16.mxu0 0
    %1850 = vmatpush2.bf16.msra.mxu0 %v1408
    %1851 = vmatprep.subr.bf16.mxu0 0
    %1852 = vmatpush2.bf16.msra.mxu0 %v1407
    %1853 = vmatprep.subr.bf16.mxu0 0
    %1854 = vmatpush2.bf16.msra.mxu0 %v1406
    %1855 = vmatprep.subr.bf16.mxu0 0
    %1856 = vmatpush2.bf16.msra.mxu0 %v1405
    %1857 = vmatprep.subr.bf16.mxu0 0
    %1858 = vmatpush2.bf16.msra.mxu0 %v1404
    %1859 = vmatprep.subr.bf16.mxu0 0
    %1860 = vmatpush2.bf16.msra.mxu0 %v1403
    %1861 = vmatprep.mubr.bf16.mxu0 %v552
    %1862 = vmatmul.mubr.bf16.gmra.mxu0 %v551
    %v1863 = vpop.f32.mrf.mxu0
    %v1864 = vadd.f32 %v1823, %v1863
    %v1865 = vpop.f32.mrf.mxu0
    %v1866 = vpop.f32.mrf.mxu0
    %v1867 = vadd.f32 %v1826, %v1866
    %v1868 = vpop.f32.mrf.mxu0
    %1869 = vdwg.mxu0
    %1870 = vmatprep.subr.bf16.mxu0 0
    %1871 = vmatpush1.bf16.msra.mxu0 %v1418
    %1872 = vmatprep.subr.bf16.mxu0 0
    %1873 = vmatpush1.bf16.msra.mxu0 %v1417
    %1874 = vmatprep.subr.bf16.mxu0 0
    %1875 = vmatpush1.bf16.msra.mxu0 %v1416
    %1876 = vmatprep.subr.bf16.mxu0 0
    %1877 = vmatpush1.bf16.msra.mxu0 %v1415
    %1878 = vmatprep.subr.bf16.mxu0 0
    %1879 = vmatpush1.bf16.msra.mxu0 %v1414
    %1880 = vmatprep.subr.bf16.mxu0 0
    %1881 = vmatpush1.bf16.msra.mxu0 %v1413
    %1882 = vmatprep.subr.bf16.mxu0 0
    %1883 = vmatpush1.bf16.msra.mxu0 %v1412
    %1884 = vmatprep.subr.bf16.mxu0 0
    %1885 = vmatpush1.bf16.msra.mxu0 %v1411
    %1886 = vmatprep.subr.bf16.mxu0 0
    %1887 = vmatpush2.bf16.msra.mxu0 %v1426
    %1888 = vmatprep.subr.bf16.mxu0 0
    %1889 = vmatpush2.bf16.msra.mxu0 %v1425
    %1890 = vmatprep.subr.bf16.mxu0 0
    %1891 = vmatpush2.bf16.msra.mxu0 %v1424
    %1892 = vmatprep.subr.bf16.mxu0 0
    %1893 = vmatpush2.bf16.msra.mxu0 %v1423
    %1894 = vmatprep.subr.bf16.mxu0 0
    %1895 = vmatpush2.bf16.msra.mxu0 %v1422
    %1896 = vmatprep.subr.bf16.mxu0 0
    %1897 = vmatpush2.bf16.msra.mxu0 %v1421
    %1898 = vmatprep.subr.bf16.mxu0 0
    %1899 = vmatpush2.bf16.msra.mxu0 %v1420
    %1900 = vmatprep.subr.bf16.mxu0 0
    %1901 = vmatpush2.bf16.msra.mxu0 %v1419
    %1902 = vmatprep.mubr.bf16.mxu0 %v554
    %1903 = vmatmul.mubr.bf16.gmra.mxu0 %v553
    %v1904 = vpop.f32.mrf.mxu0
    %v1905 = vadd.f32 %v1864, %v1904
    %v1906 = vpop.f32.mrf.mxu0
    %v1907 = vpop.f32.mrf.mxu0
    %v1908 = vadd.f32 %v1867, %v1907
    %v1909 = vpop.f32.mrf.mxu0
    %1910 = vdwg.mxu0
    %1911 = vmatprep.subr.bf16.mxu0 0
    %1912 = vmatpush1.bf16.msra.mxu0 %v1434
    %1913 = vmatprep.subr.bf16.mxu0 0
    %1914 = vmatpush1.bf16.msra.mxu0 %v1433
    %1915 = vmatprep.subr.bf16.mxu0 0
    %1916 = vmatpush1.bf16.msra.mxu0 %v1432
    %1917 = vmatprep.subr.bf16.mxu0 0
    %1918 = vmatpush1.bf16.msra.mxu0 %v1431
    %1919 = vmatprep.subr.bf16.mxu0 0
    %1920 = vmatpush1.bf16.msra.mxu0 %v1430
    %1921 = vmatprep.subr.bf16.mxu0 0
    %1922 = vmatpush1.bf16.msra.mxu0 %v1429
    %1923 = vmatprep.subr.bf16.mxu0 0
    %1924 = vmatpush1.bf16.msra.mxu0 %v1428
    %1925 = vmatprep.subr.bf16.mxu0 0
    %1926 = vmatpush1.bf16.msra.mxu0 %v1427
    %1927 = vmatprep.subr.bf16.mxu0 0
    %1928 = vmatpush2.bf16.msra.mxu0 %v1442
    %1929 = vmatprep.subr.bf16.mxu0 0
    %1930 = vmatpush2.bf16.msra.mxu0 %v1441
    %1931 = vmatprep.subr.bf16.mxu0 0
    %1932 = vmatpush2.bf16.msra.mxu0 %v1440
    %1933 = vmatprep.subr.bf16.mxu0 0
    %1934 = vmatpush2.bf16.msra.mxu0 %v1439
    %1935 = vmatprep.subr.bf16.mxu0 0
    %1936 = vmatpush2.bf16.msra.mxu0 %v1438
    %1937 = vmatprep.subr.bf16.mxu0 0
    %1938 = vmatpush2.bf16.msra.mxu0 %v1437
    %1939 = vmatprep.subr.bf16.mxu0 0
    %1940 = vmatpush2.bf16.msra.mxu0 %v1436
    %1941 = vmatprep.subr.bf16.mxu0 0
    %1942 = vmatpush2.bf16.msra.mxu0 %v1435
    %1943 = vmatprep.mubr.bf16.mxu0 %v556
    %1944 = vmatmul.mubr.bf16.gmra.mxu0 %v555
    %v1945 = vpop.f32.mrf.mxu0
    %v1946 = vadd.f32 %v1905, %v1945
    %v1947 = vpop.f32.mrf.mxu0
    %v1948 = vpop.f32.mrf.mxu0
    %v1949 = vadd.f32 %v1908, %v1948
    %v1950 = vpop.f32.mrf.mxu0
    %1951 = vdwg.mxu0
    %1952 = vmatprep.subr.bf16.mxu0 0
    %1953 = vmatpush1.bf16.msra.mxu0 %v1450
    %1954 = vmatprep.subr.bf16.mxu0 0
    %1955 = vmatpush1.bf16.msra.mxu0 %v1449
    %1956 = vmatprep.subr.bf16.mxu0 0
    %1957 = vmatpush1.bf16.msra.mxu0 %v1448
    %1958 = vmatprep.subr.bf16.mxu0 0
    %1959 = vmatpush1.bf16.msra.mxu0 %v1447
    %1960 = vmatprep.subr.bf16.mxu0 0
    %1961 = vmatpush1.bf16.msra.mxu0 %v1446
    %1962 = vmatprep.subr.bf16.mxu0 0
    %1963 = vmatpush1.bf16.msra.mxu0 %v1445
    %1964 = vmatprep.subr.bf16.mxu0 0
    %1965 = vmatpush1.bf16.msra.mxu0 %v1444
    %1966 = vmatprep.subr.bf16.mxu0 0
    %1967 = vmatpush1.bf16.msra.mxu0 %v1443
    %1968 = vmatprep.subr.bf16.mxu0 0
    %1969 = vmatpush2.bf16.msra.mxu0 %v1458
    %1970 = vmatprep.subr.bf16.mxu0 0
    %1971 = vmatpush2.bf16.msra.mxu0 %v1457
    %1972 = vmatprep.subr.bf16.mxu0 0
    %1973 = vmatpush2.bf16.msra.mxu0 %v1456
    %1974 = vmatprep.subr.bf16.mxu0 0
    %1975 = vmatpush2.bf16.msra.mxu0 %v1455
    %1976 = vmatprep.subr.bf16.mxu0 0
    %1977 = vmatpush2.bf16.msra.mxu0 %v1454
    %1978 = vmatprep.subr.bf16.mxu0 0
    %1979 = vmatpush2.bf16.msra.mxu0 %v1453
    %1980 = vmatprep.subr.bf16.mxu0 0
    %1981 = vmatpush2.bf16.msra.mxu0 %v1452
    %1982 = vmatprep.subr.bf16.mxu0 0
    %1983 = vmatpush2.bf16.msra.mxu0 %v1451
    %1984 = vmatprep.mubr.bf16.mxu0 %v558
    %1985 = vmatmul.mubr.bf16.gmra.mxu0 %v557
    %v1986 = vpop.f32.mrf.mxu0
    %v1987 = vadd.f32 %v1946, %v1986
    %v1988 = vpop.f32.mrf.mxu0
    %v1989 = vpop.f32.mrf.mxu0
    %v1990 = vadd.f32 %v1949, %v1989
    %v1991 = vpop.f32.mrf.mxu0
    %1992 = vdwg.mxu0
    %1993 = vmatprep.subr.bf16.mxu0 0
    %1994 = vmatpush1.bf16.msra.mxu0 %v1466
    %1995 = vmatprep.subr.bf16.mxu0 0
    %1996 = vmatpush1.bf16.msra.mxu0 %v1465
    %1997 = vmatprep.subr.bf16.mxu0 0
    %1998 = vmatpush1.bf16.msra.mxu0 %v1464
    %1999 = vmatprep.subr.bf16.mxu0 0
    %2000 = vmatpush1.bf16.msra.mxu0 %v1463
    %2001 = vmatprep.subr.bf16.mxu0 0
    %2002 = vmatpush1.bf16.msra.mxu0 %v1462
    %2003 = vmatprep.subr.bf16.mxu0 0
    %2004 = vmatpush1.bf16.msra.mxu0 %v1461
    %2005 = vmatprep.subr.bf16.mxu0 0
    %2006 = vmatpush1.bf16.msra.mxu0 %v1460
    %2007 = vmatprep.subr.bf16.mxu0 0
    %2008 = vmatpush1.bf16.msra.mxu0 %v1459
    %2009 = vmatprep.subr.bf16.mxu0 0
    %2010 = vmatpush2.bf16.msra.mxu0 %v1474
    %2011 = vmatprep.subr.bf16.mxu0 0
    %2012 = vmatpush2.bf16.msra.mxu0 %v1473
    %2013 = vmatprep.subr.bf16.mxu0 0
    %2014 = vmatpush2.bf16.msra.mxu0 %v1472
    %2015 = vmatprep.subr.bf16.mxu0 0
    %2016 = vmatpush2.bf16.msra.mxu0 %v1471
    %2017 = vmatprep.subr.bf16.mxu0 0
    %2018 = vmatpush2.bf16.msra.mxu0 %v1470
    %2019 = vmatprep.subr.bf16.mxu0 0
    %2020 = vmatpush2.bf16.msra.mxu0 %v1469
    %2021 = vmatprep.subr.bf16.mxu0 0
    %2022 = vmatpush2.bf16.msra.mxu0 %v1468
    %2023 = vmatprep.subr.bf16.mxu0 0
    %2024 = vmatpush2.bf16.msra.mxu0 %v1467
    %2025 = vmatprep.mubr.bf16.mxu0 %v560
    %2026 = vmatmul.mubr.bf16.gmra.mxu0 %v559
    %v2027 = vpop.f32.mrf.mxu0
    %v2028 = vadd.f32 %v1987, %v2027
    %v2029 = vpop.f32.mrf.mxu0
    %v2030 = vpop.f32.mrf.mxu0
    %v2031 = vadd.f32 %v1990, %v2030
    %v2032 = vpop.f32.mrf.mxu0
    %2033 = vdwg.mxu0
    %2034 = vmatprep.subr.bf16.mxu0 0
    %2035 = vmatpush1.bf16.msra.mxu0 %v1482
    %2036 = vmatprep.subr.bf16.mxu0 0
    %2037 = vmatpush1.bf16.msra.mxu0 %v1481
    %2038 = vmatprep.subr.bf16.mxu0 0
    %2039 = vmatpush1.bf16.msra.mxu0 %v1480
    %2040 = vmatprep.subr.bf16.mxu0 0
    %2041 = vmatpush1.bf16.msra.mxu0 %v1479
    %2042 = vmatprep.subr.bf16.mxu0 0
    %2043 = vmatpush1.bf16.msra.mxu0 %v1478
    %2044 = vmatprep.subr.bf16.mxu0 0
    %2045 = vmatpush1.bf16.msra.mxu0 %v1477
    %2046 = vmatprep.subr.bf16.mxu0 0
    %2047 = vmatpush1.bf16.msra.mxu0 %v1476
    %2048 = vmatprep.subr.bf16.mxu0 0
    %2049 = vmatpush1.bf16.msra.mxu0 %v1475
    %2050 = vmatprep.subr.bf16.mxu0 0
    %2051 = vmatpush2.bf16.msra.mxu0 %v1490
    %2052 = vmatprep.subr.bf16.mxu0 0
    %2053 = vmatpush2.bf16.msra.mxu0 %v1489
    %2054 = vmatprep.subr.bf16.mxu0 0
    %2055 = vmatpush2.bf16.msra.mxu0 %v1488
    %2056 = vmatprep.subr.bf16.mxu0 0
    %2057 = vmatpush2.bf16.msra.mxu0 %v1487
    %2058 = vmatprep.subr.bf16.mxu0 0
    %2059 = vmatpush2.bf16.msra.mxu0 %v1486
    %2060 = vmatprep.subr.bf16.mxu0 0
    %2061 = vmatpush2.bf16.msra.mxu0 %v1485
    %2062 = vmatprep.subr.bf16.mxu0 0
    %2063 = vmatpush2.bf16.msra.mxu0 %v1484
    %2064 = vmatprep.subr.bf16.mxu0 0
    %2065 = vmatpush2.bf16.msra.mxu0 %v1483
    %2066 = vmatprep.mubr.bf16.mxu0 %v562
    %2067 = vmatmul.mubr.bf16.gmra.mxu0 %v561
    %v2068 = vpop.f32.mrf.mxu0
    %v2069 = vadd.f32 %v2028, %v2068
    %v2070 = vpop.f32.mrf.mxu0
    %v2071 = vpop.f32.mrf.mxu0
    %v2072 = vadd.f32 %v2031, %v2071
    %v2073 = vpop.f32.mrf.mxu0
    %2074 = vdwg.mxu0
    %2075 = vmatprep.subr.bf16.mxu0 0
    %2076 = vmatpush1.bf16.msra.mxu0 %v1498
    %2077 = vmatprep.subr.bf16.mxu0 0
    %2078 = vmatpush1.bf16.msra.mxu0 %v1497
    %2079 = vmatprep.subr.bf16.mxu0 0
    %2080 = vmatpush1.bf16.msra.mxu0 %v1496
    %2081 = vmatprep.subr.bf16.mxu0 0
    %2082 = vmatpush1.bf16.msra.mxu0 %v1495
    %2083 = vmatprep.subr.bf16.mxu0 0
    %2084 = vmatpush1.bf16.msra.mxu0 %v1494
    %2085 = vmatprep.subr.bf16.mxu0 0
    %2086 = vmatpush1.bf16.msra.mxu0 %v1493
    %2087 = vmatprep.subr.bf16.mxu0 0
    %2088 = vmatpush1.bf16.msra.mxu0 %v1492
    %2089 = vmatprep.subr.bf16.mxu0 0
    %2090 = vmatpush1.bf16.msra.mxu0 %v1491
    %2091 = vmatprep.subr.bf16.mxu0 0
    %2092 = vmatpush2.bf16.msra.mxu0 %v1506
    %2093 = vmatprep.subr.bf16.mxu0 0
    %2094 = vmatpush2.bf16.msra.mxu0 %v1505
    %2095 = vmatprep.subr.bf16.mxu0 0
    %2096 = vmatpush2.bf16.msra.mxu0 %v1504
    %2097 = vmatprep.subr.bf16.mxu0 0
    %2098 = vmatpush2.bf16.msra.mxu0 %v1503
    %2099 = vmatprep.subr.bf16.mxu0 0
    %2100 = vmatpush2.bf16.msra.mxu0 %v1502
    %2101 = vmatprep.subr.bf16.mxu0 0
    %2102 = vmatpush2.bf16.msra.mxu0 %v1501
    %2103 = vmatprep.subr.bf16.mxu0 0
    %2104 = vmatpush2.bf16.msra.mxu0 %v1500
    %2105 = vmatprep.subr.bf16.mxu0 0
    %2106 = vmatpush2.bf16.msra.mxu0 %v1499
    %2107 = vmatprep.mubr.bf16.mxu0 %v564
    %2108 = vmatmul.mubr.bf16.gmra.mxu0 %v563
    %v2109 = vpop.f32.mrf.mxu0
    %v2110 = vadd.f32 %v2069, %v2109
    %v2111 = vpop.f32.mrf.mxu0
    %v2112 = vpop.f32.mrf.mxu0
    %v2113 = vadd.f32 %v2072, %v2112
    %v2114 = vpop.f32.mrf.mxu0
    %2115 = vdwg.mxu0
    %2116 = vmatprep.subr.bf16.mxu0 0
    %2117 = vmatpush1.bf16.msra.mxu0 %v1514
    %2118 = vmatprep.subr.bf16.mxu0 0
    %2119 = vmatpush1.bf16.msra.mxu0 %v1513
    %2120 = vmatprep.subr.bf16.mxu0 0
    %2121 = vmatpush1.bf16.msra.mxu0 %v1512
    %2122 = vmatprep.subr.bf16.mxu0 0
    %2123 = vmatpush1.bf16.msra.mxu0 %v1511
    %2124 = vmatprep.subr.bf16.mxu0 0
    %2125 = vmatpush1.bf16.msra.mxu0 %v1510
    %2126 = vmatprep.subr.bf16.mxu0 0
    %2127 = vmatpush1.bf16.msra.mxu0 %v1509
    %2128 = vmatprep.subr.bf16.mxu0 0
    %2129 = vmatpush1.bf16.msra.mxu0 %v1508
    %2130 = vmatprep.subr.bf16.mxu0 0
    %2131 = vmatpush1.bf16.msra.mxu0 %v1507
    %2132 = vmatprep.subr.bf16.mxu0 0
    %2133 = vmatpush2.bf16.msra.mxu0 %v1522
    %2134 = vmatprep.subr.bf16.mxu0 0
    %2135 = vmatpush2.bf16.msra.mxu0 %v1521
    %2136 = vmatprep.subr.bf16.mxu0 0
    %2137 = vmatpush2.bf16.msra.mxu0 %v1520
    %2138 = vmatprep.subr.bf16.mxu0 0
    %2139 = vmatpush2.bf16.msra.mxu0 %v1519
    %2140 = vmatprep.subr.bf16.mxu0 0
    %2141 = vmatpush2.bf16.msra.mxu0 %v1518
    %2142 = vmatprep.subr.bf16.mxu0 0
    %2143 = vmatpush2.bf16.msra.mxu0 %v1517
    %2144 = vmatprep.subr.bf16.mxu0 0
    %2145 = vmatpush2.bf16.msra.mxu0 %v1516
    %2146 = vmatprep.subr.bf16.mxu0 0
    %2147 = vmatpush2.bf16.msra.mxu0 %v1515
    %2148 = vmatprep.mubr.bf16.mxu0 %v566
    %2149 = vmatmul.mubr.bf16.gmra.mxu0 %v565
    %v2150 = vpop.f32.mrf.mxu0
    %v2151 = vadd.f32 %v2110, %v2150
    %v2152 = vpop.f32.mrf.mxu0
    %v2153 = vpop.f32.mrf.mxu0
    %v2154 = vadd.f32 %v2113, %v2153
    %v2155 = vpop.f32.mrf.mxu0
    %2156 = vdwg.mxu0
    %2157 = vmatprep.subr.bf16.mxu0 0
    %2158 = vmatpush1.bf16.msra.mxu0 %v1530
    %2159 = vmatprep.subr.bf16.mxu0 0
    %2160 = vmatpush1.bf16.msra.mxu0 %v1529
    %2161 = vmatprep.subr.bf16.mxu0 0
    %2162 = vmatpush1.bf16.msra.mxu0 %v1528
    %2163 = vmatprep.subr.bf16.mxu0 0
    %2164 = vmatpush1.bf16.msra.mxu0 %v1527
    %2165 = vmatprep.subr.bf16.mxu0 0
    %2166 = vmatpush1.bf16.msra.mxu0 %v1526
    %2167 = vmatprep.subr.bf16.mxu0 0
    %2168 = vmatpush1.bf16.msra.mxu0 %v1525
    %2169 = vmatprep.subr.bf16.mxu0 0
    %2170 = vmatpush1.bf16.msra.mxu0 %v1524
    %2171 = vmatprep.subr.bf16.mxu0 0
    %2172 = vmatpush1.bf16.msra.mxu0 %v1523
    %2173 = vmatprep.subr.bf16.mxu0 0
    %2174 = vmatpush2.bf16.msra.mxu0 %v1538
    %2175 = vmatprep.subr.bf16.mxu0 0
    %2176 = vmatpush2.bf16.msra.mxu0 %v1537
    %2177 = vmatprep.subr.bf16.mxu0 0
    %2178 = vmatpush2.bf16.msra.mxu0 %v1536
    %2179 = vmatprep.subr.bf16.mxu0 0
    %2180 = vmatpush2.bf16.msra.mxu0 %v1535
    %2181 = vmatprep.subr.bf16.mxu0 0
    %2182 = vmatpush2.bf16.msra.mxu0 %v1534
    %2183 = vmatprep.subr.bf16.mxu0 0
    %2184 = vmatpush2.bf16.msra.mxu0 %v1533
    %2185 = vmatprep.subr.bf16.mxu0 0
    %2186 = vmatpush2.bf16.msra.mxu0 %v1532
    %2187 = vmatprep.subr.bf16.mxu0 0
    %2188 = vmatpush2.bf16.msra.mxu0 %v1531
    %2189 = vmatprep.mubr.bf16.mxu0 %v568
    %2190 = vmatmul.mubr.bf16.gmra.mxu0 %v567
    %v2191 = vpop.f32.mrf.mxu0
    %v2192 = vadd.f32 %v2151, %v2191
    %v2193 = vpop.f32.mrf.mxu0
    %v2194 = vpop.f32.mrf.mxu0
    %v2195 = vadd.f32 %v2154, %v2194
    %v2196 = vpop.f32.mrf.mxu0
    %2197 = vdwg.mxu0
    %2198 = vmatprep.subr.bf16.mxu0 0
    %2199 = vmatpush1.bf16.msra.mxu0 %v1546
    %2200 = vmatprep.subr.bf16.mxu0 0
    %2201 = vmatpush1.bf16.msra.mxu0 %v1545
    %2202 = vmatprep.subr.bf16.mxu0 0
    %2203 = vmatpush1.bf16.msra.mxu0 %v1544
    %2204 = vmatprep.subr.bf16.mxu0 0
    %2205 = vmatpush1.bf16.msra.mxu0 %v1543
    %2206 = vmatprep.subr.bf16.mxu0 0
    %2207 = vmatpush1.bf16.msra.mxu0 %v1542
    %2208 = vmatprep.subr.bf16.mxu0 0
    %2209 = vmatpush1.bf16.msra.mxu0 %v1541
    %2210 = vmatprep.subr.bf16.mxu0 0
    %2211 = vmatpush1.bf16.msra.mxu0 %v1540
    %2212 = vmatprep.subr.bf16.mxu0 0
    %2213 = vmatpush1.bf16.msra.mxu0 %v1539
    %2214 = vmatprep.subr.bf16.mxu0 0
    %2215 = vmatpush2.bf16.msra.mxu0 %v1554
    %2216 = vmatprep.subr.bf16.mxu0 0
    %2217 = vmatpush2.bf16.msra.mxu0 %v1553
    %2218 = vmatprep.subr.bf16.mxu0 0
    %2219 = vmatpush2.bf16.msra.mxu0 %v1552
    %2220 = vmatprep.subr.bf16.mxu0 0
    %2221 = vmatpush2.bf16.msra.mxu0 %v1551
    %2222 = vmatprep.subr.bf16.mxu0 0
    %2223 = vmatpush2.bf16.msra.mxu0 %v1550
    %2224 = vmatprep.subr.bf16.mxu0 0
    %2225 = vmatpush2.bf16.msra.mxu0 %v1549
    %2226 = vmatprep.subr.bf16.mxu0 0
    %2227 = vmatpush2.bf16.msra.mxu0 %v1548
    %2228 = vmatprep.subr.bf16.mxu0 0
    %2229 = vmatpush2.bf16.msra.mxu0 %v1547
    %2230 = vmatprep.mubr.bf16.mxu0 %v570
    %2231 = vmatmul.mubr.bf16.gmra.mxu0 %v569
    %v2232 = vpop.f32.mrf.mxu0
    %v2233 = vadd.f32 %v2192, %v2232
    %v2234 = vpop.f32.mrf.mxu0
    %v2235 = vpop.f32.mrf.mxu0
    %v2236 = vadd.f32 %v2195, %v2235
    %v2237 = vpop.f32.mrf.mxu0
    %2238 = vdwg.mxu0
    %v2239 = vmul.f32 %v2233, %v2233
    %v2240 = vmul.f32 %v2236, %v2236
    %2241 = vadd.xlane.f32.xlu0 %v2239
    %v2242 = vpop.xlane.xlu0 %2241
    %2243 = vadd.xlane.f32.xlu0 %v2240
    %v2244 = vpop.xlane.xlu0 %2243
    %v2245 = vrsqrt.pop %v2242
    %v2246 = vmul.f32 %v2242, %v2245
    %vm2247 = vcmp.eq.f32.partialorder %v2242, inf
    %v2248 = vsel %vm2247, %v2242, %v2246
    %vm2249 = vcmp.eq.f32.partialorder %v2242, 0.0
    %v2250 = vand.u32 %v2242, 2147483648
    %v2251 = vsel %vm2249, %v2250, %v2248
    %v2252 = vrsqrt.pop %v2244
    %v2253 = vmul.f32 %v2244, %v2252
    %vm2254 = vcmp.eq.f32.partialorder %v2244, inf
    %v2255 = vsel %vm2254, %v2244, %v2253
    %vm2256 = vcmp.eq.f32.partialorder %v2244, 0.0
    %v2257 = vand.u32 %v2244, 2147483648
    %v2258 = vsel %vm2256, %v2257, %v2255
    %v2259 = vadd.f32 %v2251, 1e-08
    %v2260 = vadd.f32 %v2258, 1e-08
    %v2261 = vrcp.pop %v2259
    %v2262 = vrcp.pop %v2260
    %v2263 = vmul.f32 %v2233, %v2261
    %v2264 = vmul.f32 %v2236, %v2262
    %v2265 = vld [vmem:[#allocation7] sm:$0xff]
    %v2266 = vld [vmem:[#allocation7 + $0x8] sm:$0xff]
    %v2267 = vmul.f32 %v2265, %v2265
    %v2268 = vmul.f32 %v2266, %v2266
    %2269 = vadd.xlane.f32.xlu0 %v2267
    %v2270 = vpop.xlane.xlu0 %2269
    %2271 = vadd.xlane.f32.xlu0 %v2268
    %v2272 = vpop.xlane.xlu0 %2271
    %v2273 = vrsqrt.pop %v2270
    %v2274 = vmul.f32 %v2270, %v2273
    %vm2275 = vcmp.eq.f32.partialorder %v2270, inf
    %v2276 = vsel %vm2275, %v2270, %v2274
    %vm2277 = vcmp.eq.f32.partialorder %v2270, 0.0
    %v2278 = vand.u32 %v2270, 2147483648
    %v2279 = vsel %vm2277, %v2278, %v2276
    %v2280 = vrsqrt.pop %v2272
    %v2281 = vmul.f32 %v2272, %v2280
    %vm2282 = vcmp.eq.f32.partialorder %v2272, inf
    %v2283 = vsel %vm2282, %v2272, %v2281
    %vm2284 = vcmp.eq.f32.partialorder %v2272, 0.0
    %v2285 = vand.u32 %v2272, 2147483648
    %v2286 = vsel %vm2284, %v2285, %v2283
    %v2287 = vadd.f32 %v2279, 1e-08
    %v2288 = vadd.f32 %v2286, 1e-08
    %v2289 = vrcp.pop %v2287
    %v2290 = vrcp.pop %v2288
    %v2291 = vmul.f32 %v2265, %v2289
    %v2292 = vmul.f32 %v2266, %v2290
    %v2293 = vmul.f32 %v2263, %v2291
    %v2294 = vmul.f32 %v2264, %v2292
    %2295 = vadd.xlane.f32.xlu0 %v2293
    %v2296 = vpop.xlane.xlu0 %2295
    %2297 = vadd.xlane.f32.xlu0 %v2294
    %v2298 = vpop.xlane.xlu0 %2297
    %v2299 = vlaneseq
    %v2300 = vshrl.u32 %v2299, 7
    %v2301 = vadd.s32 %v2300, 8
    %s2302 = smul.u32 0, 16
    %v2303 = vstv %s2302
    %v2304 = vadd.s32 %v2300, %v2303
    %v2305 = vadd.s32 %v2301, %v2303
    %vm2306 = vcmp.lt.s32.totalorder %v2304, 2
    %vm2307 = vcmp.lt.s32.totalorder %v2305, 2
    %v2308 = vsub.f32 1.0, %v2296
    %v2309 = vsub.f32 1.0, %v2298
    %v2310 = vsel %vm2306, %v2308, 0.0
    %v2311 = vsel %vm2307, %v2309, 0.0
    %2312 = vst [vmem:[#allocation8] sm:$0xff] %v2310
    %2313 = vst [vmem:[#allocation8 + $0x8] sm:$0xff] %v2311
    // Predicated region
    $region30: #{tpu_custom_call.1} parent=1 // pred_check
      _
    $region31: #{tpu_custom_call.1} parent=1 // pred_check_branch
      %2315 = sbr.rel (0) target = $region33
    $region32: #{tpu_custom_call.1} parent=1 // pred_region
      %s2317 = ssub.s32 256, 256
      %2318 = vsyncadd [#allocation4], %s2317
      %s2319 = sshll.u32 [#allocation8], 4
      %s2320 = int_to_ptr.vmem [resolvable:$true] %s2319
      %2325 = dma.vmem_to_hbm [thread:$0]  %s2320, 256, %s4, [#allocation4], 128, 128, 8
    $region33: #{tpu_custom_call.1} parent=1 // pred_fallthru
      _
    // Predicated region
    $region34: #{tpu_custom_call.1} parent=1 // pred_check
      _
    $region35: #{tpu_custom_call.1} parent=1 // pred_check_branch
      %2327 = sbr.rel (0) target = $region37
    $region36: #{tpu_custom_call.1} parent=1 // pred_region
      %2328 = dma.done [#allocation4], 256
    $region37: #{tpu_custom_call.1} parent=1 // pred_fallthru
      _
    %2329 = vsyncpa [#allocation3], 1
    %2330 = vsyncpa [#allocation6], 1
    %2331 = vsyncpa [#allocation4], 1

</llo_original>
